<compile_context>
chip_gen: v6e
topology: v6e:2x2x1
jax: 0.10.0
libtpu: 0.0.40
codegen_flags: <defaults>
</compile_context>

<pallas_src>
import jax
import jax.numpy as jnp
import numpy as np
from jax.experimental import pallas as pl
from jax.experimental.pallas import tpu as pltpu


# ----------------------------------------------------------------------------
# Fused PoolingClassifier kernel (eval mode), K-reduction grid over H:
#   per grid step k (H-chunk of size hk):
#     z    = relu(x @ W1'[:, chunk] + b1'[chunk])       one (16,128)x(128,hk) MXU pass
#     cum  = segment-wise cumulative max of z            (log2(T) shifted maxes)
#     o   += cum_bf16 @ Wc_slab[chunk, :]                one (16,hk)x(hk,128) MXU pass
#   o is the resident (T*B, T*C) f32 accumulator, initialized with the bias at k==0.
#   Wrapper extracts the per-segment diagonal blocks (row t*B+b, cols t*C:(t+1)*C).
# ----------------------------------------------------------------------------
def _make_head_kernel(T, B):
    TB = T * B

    def kernel(x_ref, w1_ref, b1_ref, wc_ref, bc_ref, o_ref):
        k = pl.program_id(0)

        # Batched MLP chunk: fused Linear + folded-BatchNorm + ReLU (bf16 MXU, f32 acc).
        z = jnp.dot(x_ref[...], w1_ref[...], preferred_element_type=jnp.float32)
        z = jnp.maximum(z + b1_ref[...], 0.0)                        # (TB, hk) f32

        # Cumulative max over segments.  Rows are segment-major (row = t*B + b) and the
        # max-pool is elementwise in H, so it commutes with the H chunking.
        # Hillis-Steele prefix max: ceil(log2 T) shifted maxes on the full tile.
        cum = z
        s = B
        while s < TB:
            pad = jnp.full((s, cum.shape[1]), -jnp.inf, cum.dtype)
            shifted = jnp.concatenate([pad, cum[:TB - s]], axis=0)   # rows moved down by s
            cum = jnp.maximum(cum, shifted)
            s *= 2

        # All T classifiers at once against this H-chunk of the resident (H, T*C) slab.
        part = jnp.dot(cum.astype(jnp.bfloat16), wc_ref[...],
                       preferred_element_type=jnp.float32)           # (TB, T*C)

        @pl.when(k == 0)
        def _():
            o_ref[...] = jnp.zeros_like(o_ref) + bc_ref[...]         # init accumulator + bias

        o_ref[...] += part

    return kernel


def pooling_classifier_fused(x_2d, w1, b1, wc_slab, bc_slab, *, num_segment, batch, hk):
    """x_2d: (T*B, Dp) bf16 segment-major rows; returns full logits tile (T*B, T*C) f32."""
    TB, Dp = x_2d.shape
    H = w1.shape[-1]
    TC = wc_slab.shape[-1]
    assert TB == num_segment * batch and H % hk == 0
    return pl.pallas_call(
        _make_head_kernel(num_segment, batch),
        out_shape=jax.ShapeDtypeStruct((TB, TC), jnp.float32),
        grid=(H // hk,),
        in_specs=[
            pl.BlockSpec((TB, Dp), lambda k: (0, 0)),   # x tile (bf16), resident
            pl.BlockSpec((Dp, hk), lambda k: (0, k)),   # W1' chunk (bf16), streamed once
            pl.BlockSpec((1, hk), lambda k: (0, k)),    # folded-BN bias chunk (f32)
            pl.BlockSpec((hk, TC), lambda k: (k, 0)),   # Wc slab chunk (bf16), streamed once
            pl.BlockSpec((1, TC), lambda k: (0, 0)),    # bc slab (f32), resident
        ],
        out_specs=pl.BlockSpec((TB, TC), lambda k: (0, 0)),  # resident (16,128) f32 accumulator
        compiler_params=pltpu.CompilerParams(dimension_semantics=("arbitrary",)),
    )(x_2d, w1, b1, wc_slab, bc_slab)


# ----------------------------------------------------------------------------
# TSNet (static_inference path) — parameters built deterministically in-script.
# ----------------------------------------------------------------------------
class TSNetPallas:
    def __init__(self, key, *, num_classes=16, num_segment=8, in_channels=4,
                 last_dim=64, policy_feat_dim=32, mlp_hidden=4096,
                 channel_list=(0.0, 0.25, 0.5, 0.75, 1.0)):
        self.num_classes = num_classes
        self.num_segment = num_segment
        self.last_dim = last_dim
        self.policy_feat_dim = policy_feat_dim
        self.mlp_hidden = mlp_hidden
        self.channel_list = channel_list
        self.cat_dim = last_dim + policy_feat_dim
        slim_c = int(round(0.25 * last_dim))

        ks = jax.random.split(key, 12)
        sc = lambda fan_in: 1.0 / np.sqrt(fan_in)

        # PoolingClassifier.mlp : Linear(cat_dim, 4096) + BatchNorm1d(4096) + ReLU (eval)
        self.w1 = jax.random.normal(ks[0], (self.cat_dim, mlp_hidden), jnp.float32) * sc(self.cat_dim)
        self.b1 = jax.random.normal(ks[1], (mlp_hidden,), jnp.float32) * 0.01
        self.bn_gamma = 1.0 + 0.1 * jax.random.normal(ks[2], (mlp_hidden,), jnp.float32)
        self.bn_beta = 0.1 * jax.random.normal(ks[3], (mlp_hidden,), jnp.float32)
        self.bn_mean = 0.1 * jax.random.normal(ks[4], (mlp_hidden,), jnp.float32)
        self.bn_var = 0.5 + jax.random.uniform(ks[5], (mlp_hidden,), jnp.float32)

        # PoolingClassifier.classifiers[m] : Dropout(eval=id) + Linear(4096, num_classes)
        self.wc = jax.random.normal(ks[6], (num_segment, mlp_hidden, num_classes), jnp.float32) * sc(mlp_hidden)
        self.bc = jax.random.normal(ks[7], (num_segment, 1, num_classes), jnp.float32) * 0.01

        # Stand-in feature extractors (real nets not provided, see TODOs in forward).
        self.w_policy = jax.random.normal(ks[8], (in_channels, policy_feat_dim), jnp.float32) * sc(in_channels)
        self.b_policy = jax.random.normal(ks[9], (policy_feat_dim,), jnp.float32) * 0.01
        self.w_backbone = jax.random.normal(ks[10], (in_channels, slim_c), jnp.float32) * sc(in_channels)
        self.b_backbone = jax.random.normal(ks[11], (slim_c,), jnp.float32) * 0.01

        # ---- kernel-packed parameters (inference-time constants) ----
        eps = 1e-5
        scale = self.bn_gamma * jax.lax.rsqrt(self.bn_var + eps)       # fold BN into Linear
        w1_fold = self.w1 * scale[None, :]
        b1_fold = (self.b1 - self.bn_mean) * scale + self.bn_beta
        self.pad_dim = int(pl.cdiv(self.cat_dim, 128)) * 128           # 96 -> 128 (lane align)
        w1_pad = jnp.zeros((self.pad_dim, mlp_hidden), jnp.float32)
        w1_pad = w1_pad.at[: self.cat_dim].set(w1_fold)
        self.w1_k = w1_pad.astype(jnp.bfloat16)                        # (Dp, H) bf16
        self.b1_k = b1_fold.reshape(1, mlp_hidden)                     # (1, H) f32
        # (T, H, C) -> lane-dense resident (H, T*C) slab; slab[:, t*C + c] == wc[t, :, c]
        self.wc_k = jnp.transpose(self.wc, (1, 0, 2)).reshape(
            mlp_hidden, num_segment * num_classes).astype(jnp.bfloat16)
        self.bc_k = self.bc.reshape(1, num_segment * num_classes)      # (1, T*C) f32
        # H-chunk size for the K-reduction grid (keep large: per-step overhead ~0.35 us).
        self.hk = 2048 if mlp_hidden % 2048 == 0 else mlp_hidden

    # PoolingClassifier.forward — fully fused into one Pallas kernel.
    def final_classifier(self, x):
        b = x.shape[0]
        T, C = self.num_segment, self.num_classes
        # segment-major (T*b, Dp) bf16 tile (sublane-aligned: T*b = 16 rows)
        xp = jnp.pad(x, ((0, 0), (0, 0), (0, self.pad_dim - self.cat_dim)))
        x_2d = jnp.transpose(xp, (1, 0, 2)).reshape(T * b, self.pad_dim).astype(jnp.bfloat16)
        full = pooling_classifier_fused(x_2d, self.w1_k, self.b1_k, self.wc_k, self.bc_k,
                                        num_segment=T, batch=b, hk=self.hk)  # (T*b, T*C)
        # keep the per-segment diagonal blocks: row t*b + i, cols t*C:(t+1)*C
        full4 = full.reshape(T, b, T, C)
        idx = jnp.arange(T)
        diag = full4[idx, :, idx, :]                    # (T, b, C)
        logits = jnp.transpose(diag, (1, 0, 2))         # (b, T, C)
        last_out = logits[:, -1, :]
        return logits.reshape(b * T, C), last_out

    # TSNet.forward, stage == 'static_inference'
    def forward(self, x):
        b, t, c, h, w = x.shape
        x2 = x.reshape(-1, c, h, w)

        # TODO(synk): PolicyNet (mobilenetv2 feat_net + gate) source not provided;
        # stand-in = global-avg-pool + Linear, deterministic gates picking ratio 0.25.
        gap = x2.mean(axis=(2, 3))                                      # (b*t, c)
        policy_feat = jax.nn.relu(gap @ self.w_policy + self.b_policy)  # (b*t, feat_dim)
        g_idx = jnp.ones((b * t,), jnp.int32)                           # channel_list[1] = 0.25
        g_hard = jax.nn.one_hot(g_idx, len(self.channel_list), dtype=jnp.float32)

        # TODO(synk): resnet50.feature_forward at channel_ratio=0.25 not provided;
        # stand-in = global-avg-pool + Linear producing 0.25*last_dim slim features.
        slim_feat = jax.nn.relu(gap @ self.w_backbone + self.b_backbone)  # (b*t, slim_c)
        pad_feat = jnp.concatenate(
            [slim_feat,
             jnp.zeros((b * t, self.last_dim - slim_feat.shape[-1]), jnp.float32)], axis=-1)
        cat_feat = jnp.concatenate([policy_feat, pad_feat], axis=-1)       # (b*t, cat_dim)
        cat_feat_v = cat_feat.reshape(-1, self.num_segment, self.cat_dim)  # (b, T, cat_dim)
        cat_logit, cat_pred = self.final_classifier(cat_feat_v)
        return cat_logit, cat_pred, g_hard, g_idx


# Pure-JAX reference of PoolingClassifier (original un-folded f32 math) for checking.
def reference_final_classifier(m, x):
    _b = x.shape[0]
    xf = x.reshape(-1, m.cat_dim)
    h = xf @ m.w1 + m.b1
    h = (h - m.bn_mean) / jnp.sqrt(m.bn_var + 1e-5) * m.bn_gamma + m.bn_beta
    z = jnp.maximum(h, 0.0).reshape(_b, m.num_segment, -1)
    outs = []
    cur_z = z[:, 0]
    for s in range(m.num_segment):
        if s > 0:
            cur_z = jnp.maximum(z[:, s], cur_z)
        outs.append(cur_z @ m.wc[s] + m.bc[s, 0])
    logits = jnp.stack(outs, axis=1)
    last_out = logits[:, -1, :].reshape(_b, -1)
    return logits.reshape(_b * m.num_segment, -1), last_out


if __name__ == "__main__":
    key = jax.random.PRNGKey(0)
    k_x, k_p = jax.random.split(key)

    b, t, c, h, w = 2, 8, 4, 16, 16
    x = jax.random.normal(k_x, (b, t, c, h, w), jnp.float32)

    model = TSNetPallas(k_p, num_classes=16, num_segment=t, in_channels=c,
                        last_dim=64, policy_feat_dim=32, mlp_hidden=4096)

    cat_logit, cat_pred, g_hard, g_idx = model.forward(x)
    jax.block_until_ready((cat_logit, cat_pred, g_hard, g_idx))

    # Verify the fused Pallas head against the plain-JAX f32 reference.
    # (Weights are streamed in bf16 -> tolerances are relaxed vs. a pure-f32 path.)
    x2 = x.reshape(-1, c, h, w)
    gap = x2.mean(axis=(2, 3))
    policy_feat = jax.nn.relu(gap @ model.w_policy + model.b_policy)
    slim_feat = jax.nn.relu(gap @ model.w_backbone + model.b_backbone)
    pad_feat = jnp.concatenate(
        [slim_feat, jnp.zeros((b * t, model.last_dim - slim_feat.shape[-1]), jnp.float32)], -1)
    cat_feat_v = jnp.concatenate([policy_feat, pad_feat], -1).reshape(-1, t, model.cat_dim)
    ref_logit, ref_pred = reference_final_classifier(model, cat_feat_v)

    np.testing.assert_allclose(np.asarray(cat_logit), np.asarray(ref_logit), rtol=2e-2, atol=1e-2)
    np.testing.assert_allclose(np.asarray(cat_pred), np.asarray(ref_pred), rtol=2e-2, atol=1e-2)

    assert cat_logit.shape == (b * t, model.num_classes)
    assert cat_pred.shape == (b, model.num_classes)
    print("KERNEL_OK")
</pallas_src>

<mosaic_0001>
module attributes {stable_mosaic.version = 11 : i64} {
  func.func @kernel(%arg0: i32, %arg1: memref<16x128xbf16, #tpu.memory_space<vmem>>, %arg2: memref<128x2048xbf16, #tpu.memory_space<vmem>>, %arg3: memref<1x2048xf32, #tpu.memory_space<vmem>>, %arg4: memref<2048x128xbf16, #tpu.memory_space<vmem>>, %arg5: memref<1x128xf32, #tpu.memory_space<vmem>>, %arg6: memref<16x128xf32, #tpu.memory_space<vmem>>) attributes {dimension_semantics = [#tpu.dimension_semantics<arbitrary>], iteration_bounds = array<i64: 2>, scalar_prefetch = 0 : i64, scratch_operands = 0 : i64, tpu.core_type = #tpu.core_type<tc>, window_params = [{pipeline_mode = #tpu.pipeline_mode<synchronous>, transform_indices = @transform_0, window_bounds = array<i64: 16, 128>}, {transform_indices = @transform_1, window_bounds = array<i64: 128, 2048>}, {transform_indices = @transform_2, window_bounds = array<i64: 1, 2048>}, {transform_indices = @transform_3, window_bounds = array<i64: 2048, 128>}, {pipeline_mode = #tpu.pipeline_mode<synchronous>, transform_indices = @transform_4, window_bounds = array<i64: 1, 128>}, {pipeline_mode = #tpu.pipeline_mode<synchronous>, transform_indices = @transform_5, window_bounds = array<i64: 16, 128>}]} {
    %c0 = arith.constant 0 : index
    %c0_0 = arith.constant 0 : index
    %0 = vector.load %arg1[%c0, %c0_0] : memref<16x128xbf16, #tpu.memory_space<vmem>>, vector<16x128xbf16>
    %c0_1 = arith.constant 0 : index
    %c0_2 = arith.constant 0 : index
    %1 = vector.load %arg2[%c0_1, %c0_2] : memref<128x2048xbf16, #tpu.memory_space<vmem>>, vector<128x2048xbf16>
    %cst = arith.constant dense<0.000000e+00> : vector<16x2048xf32>
    %2 = tpu.matmul %0, %1, %cst {dimension_numbers = #tpu.dot_dimension_numbers<[1], [0], [0], [1], [0, 0, 1, 1], [], []>} : vector<16x128xbf16>, vector<128x2048xbf16>, vector<16x2048xf32> -> vector<16x2048xf32>
    %c0_3 = arith.constant 0 : index
    %c0_4 = arith.constant 0 : index
    %3 = vector.load %arg3[%c0_3, %c0_4] : memref<1x2048xf32, #tpu.memory_space<vmem>>, vector<1x2048xf32>
    %4 = vector.broadcast %3 : vector<1x2048xf32> to vector<16x2048xf32>
    %5 = arith.addf %2, %4 : vector<16x2048xf32>
    %cst_5 = arith.constant 0.000000e+00 : f32
    %6 = vector.broadcast %cst_5 : f32 to vector<16x2048xf32>
    %7 = arith.maximumf %5, %6 : vector<16x2048xf32>
    %cst_6 = arith.constant 0xFF800000 : f32
    %8 = vector.broadcast %cst_6 : f32 to vector<2x2048xf32>
    %9 = vector.extract_strided_slice %7 {offsets = [0, 0], sizes = [14, 2048], strides = [1, 1]} : vector<16x2048xf32> to vector<14x2048xf32>
    %10 = tpu.concatenate %8, %9 in 0 : vector<2x2048xf32>, vector<14x2048xf32> -> vector<16x2048xf32>
    %11 = arith.maximumf %7, %10 : vector<16x2048xf32>
    %cst_7 = arith.constant 0xFF800000 : f32
    %12 = vector.broadcast %cst_7 : f32 to vector<4x2048xf32>
    %13 = vector.extract_strided_slice %11 {offsets = [0, 0], sizes = [12, 2048], strides = [1, 1]} : vector<16x2048xf32> to vector<12x2048xf32>
    %14 = tpu.concatenate %12, %13 in 0 : vector<4x2048xf32>, vector<12x2048xf32> -> vector<16x2048xf32>
    %15 = arith.maximumf %11, %14 : vector<16x2048xf32>
    %cst_8 = arith.constant 0xFF800000 : f32
    %16 = vector.broadcast %cst_8 : f32 to vector<8x2048xf32>
    %17 = vector.extract_strided_slice %15 {offsets = [0, 0], sizes = [8, 2048], strides = [1, 1]} : vector<16x2048xf32> to vector<8x2048xf32>
    %18 = tpu.concatenate %16, %17 in 0 : vector<8x2048xf32>, vector<8x2048xf32> -> vector<16x2048xf32>
    %19 = arith.maximumf %15, %18 : vector<16x2048xf32>
    %20 = arith.truncf %19 : vector<16x2048xf32> to vector<16x2048xbf16>
    %c0_9 = arith.constant 0 : index
    %c0_10 = arith.constant 0 : index
    %21 = vector.load %arg4[%c0_9, %c0_10] : memref<2048x128xbf16, #tpu.memory_space<vmem>>, vector<2048x128xbf16>
    %cst_11 = arith.constant dense<0.000000e+00> : vector<16x128xf32>
    %22 = tpu.matmul %20, %21, %cst_11 {dimension_numbers = #tpu.dot_dimension_numbers<[1], [0], [0], [1], [0, 0, 1, 1], [], []>} : vector<16x2048xbf16>, vector<2048x128xbf16>, vector<16x128xf32> -> vector<16x128xf32>
    %c0_i32 = arith.constant 0 : i32
    %23 = arith.cmpi eq, %arg0, %c0_i32 : i32
    %24 = arith.extui %23 : i1 to i32
    %c0_i32_12 = arith.constant 0 : i32
    %25 = arith.cmpi ne, %24, %c0_i32_12 : i32
    scf.if %25 {
      %cst_17 = arith.constant 0.000000e+00 : f32
      %29 = vector.broadcast %cst_17 : f32 to vector<16x128xf32>
      %c0_18 = arith.constant 0 : index
      %c0_19 = arith.constant 0 : index
      %30 = vector.load %arg5[%c0_18, %c0_19] : memref<1x128xf32, #tpu.memory_space<vmem>>, vector<1x128xf32>
      %31 = vector.broadcast %30 : vector<1x128xf32> to vector<16x128xf32>
      %32 = arith.addf %29, %31 : vector<16x128xf32>
      %c0_20 = arith.constant 0 : index
      %c0_21 = arith.constant 0 : index
      %33 = vector.load %arg6[%c0_20, %c0_21] : memref<16x128xf32, #tpu.memory_space<vmem>>, vector<16x128xf32>
      tpu.vector_store %arg6[%c0_20, %c0_21], %32 {strides = array<i32>} : memref<16x128xf32, #tpu.memory_space<vmem>>, vector<16x128xf32>,
    } else {
    }
    %c0_13 = arith.constant 0 : index
    %c0_14 = arith.constant 0 : index
    %26 = vector.load %arg6[%c0_13, %c0_14] : memref<16x128xf32, #tpu.memory_space<vmem>>, vector<16x128xf32>
    %27 = arith.addf %26, %22 : vector<16x128xf32>
    %c0_15 = arith.constant 0 : index
    %c0_16 = arith.constant 0 : index
    %28 = vector.load %arg6[%c0_15, %c0_16] : memref<16x128xf32, #tpu.memory_space<vmem>>, vector<16x128xf32>
    tpu.vector_store %arg6[%c0_15, %c0_16], %27 {strides = array<i32>} : memref<16x128xf32, #tpu.memory_space<vmem>>, vector<16x128xf32>,
    return
  }
  func.func @transform_0(%arg0: i32) -> (i32, i32) {
    %c0_i32 = arith.constant 0 : i32
    %c0_i32_0 = arith.constant 0 : i32
    %c0_i32_1 = arith.constant 0 : i32
    return %c0_i32, %c0_i32_0 : i32, i32
  }
  func.func @transform_1(%arg0: i32) -> (i32, i32) {
    %c0_i32 = arith.constant 0 : i32
    %c0_i32_0 = arith.constant 0 : i32
    return %c0_i32, %arg0 : i32, i32
  }
  func.func @transform_2(%arg0: i32) -> (i32, i32) {
    %c0_i32 = arith.constant 0 : i32
    %c0_i32_0 = arith.constant 0 : i32
    return %c0_i32, %arg0 : i32, i32
  }
  func.func @transform_3(%arg0: i32) -> (i32, i32) {
    %c0_i32 = arith.constant 0 : i32
    %c0_i32_0 = arith.constant 0 : i32
    return %arg0, %c0_i32 : i32, i32
  }
  func.func @transform_4(%arg0: i32) -> (i32, i32) {
    %c0_i32 = arith.constant 0 : i32
    %c0_i32_0 = arith.constant 0 : i32
    %c0_i32_1 = arith.constant 0 : i32
    return %c0_i32, %c0_i32_0 : i32, i32
  }
  func.func @transform_5(%arg0: i32) -> (i32, i32) {
    %c0_i32 = arith.constant 0 : i32
    %c0_i32_0 = arith.constant 0 : i32
    %c0_i32_1 = arith.constant 0 : i32
    return %c0_i32, %c0_i32_0 : i32, i32
  }
}

</mosaic_0001>

<llo_original>
// kernel: tpu_custom_call.1
$region0: #{tpu_custom_call.1}
  #allocation0 [shape = 'u32[]', space=smem, size = 0x4, offset = 0x4, fixed_abs, tag = 'smem constant byte address 0x4 - core index']
  #allocation1 [shape = 'u32[144,128]{1,0:T(1,128)}', space=vmem, size = 0x12000, scoped, tag = 'internal scratch']
  %s0 = inlined_call_operand.hbm [shape: bf16[16,128], index: 0, kind: input, shape index: {}]
  %s1 = inlined_call_operand.hbm [shape: bf16[128,4096], index: 1, kind: input, shape index: {}]
  %s2 = inlined_call_operand.hbm [shape: f32[1,4096], index: 2, kind: input, shape index: {}]
  %s3 = inlined_call_operand.hbm [shape: bf16[4096,128], index: 3, kind: input, shape index: {}]
  %s4 = inlined_call_operand.vmem [shape: f32[1,128], index: 4, kind: input, shape index: {}]
  %s5 = inlined_call_operand.hbm [shape: f32[16,128], index: 5, kind: output, shape index: {}]
  %s6 = sld [smem:[#allocation0]]
  $region73: #{tpu_custom_call.1} parent=0
    _
  %s8 = ssub.s32 1, %s6
  %s9 = scalar_select 0, %s8, %s6
  $region1: #{tpu_custom_call.1} parent=0
    #allocation2 [shape = 'u8[4096]{0}', space=vmem, size = 0x1000, scoped, tag = 'input window, operand 0, single buffered']
    #allocation3 [shape = 's32[2]{0}', space=sflag, size = 0x8, scoped, tag = 'scoped memory for tpu_custom_call.1']
    #allocation4 [shape = 's32[2]{0}', space=sflag, size = 0x8, scoped, tag = 'scoped memory for tpu_custom_call.1']
    #allocation5 [shape = 'u8[1048576]{0}', space=vmem, size = 0x100000, scoped, tag = 'input window, operand 1']
    #allocation6 [shape = 's32[2]{0}', space=sflag, size = 0x8, scoped, tag = 'scoped memory for tpu_custom_call.1']
    #allocation7 [shape = 'u8[16384]{0}', space=vmem, size = 0x4000, scoped, tag = 'input window, operand 2']
    #allocation8 [shape = 'u8[1048576]{0}', space=vmem, size = 0x100000, scoped, tag = 'input window, operand 3']
    #allocation9 [shape = 's32[2]{0}', space=sflag, size = 0x8, scoped, tag = 'scoped memory for tpu_custom_call.1']
    #allocation10 [shape = 'u8[8192]{0}', space=vmem, size = 0x2000, scoped, tag = 'output window, operand 0, single buffered']
    %10 = vsyncpa [#allocation3], 0
    %11 = vsyncpa [#allocation6], 0
    %s12 = scalar_lea.sflag [#allocation6], 1
    %13 = vsyncpa %s12, 0
    %14 = vsyncpa [#allocation9], 0
    %s15 = scalar_lea.sflag [#allocation9], 1
    %16 = vsyncpa %s15, 0
    %17 = vsyncpa [#allocation4], 0
    loop: start=0, step=1, limit=4
    $region2: #{tpu_custom_call.1} parent=1 // loop_pre_header
      _
    $region3: #{tpu_custom_call.1} parent=1 // loop_header
      %s19 = sphi 0, %s23
      %p20 = scmp.ge.s32.totalorder %s19, 4
      %s27 = sphi 0, %s27
      %s29 = sphi 0, %s27
      %s30 = sphi 0, %s29
      %s44 = sphi 0, %s30
      %s50 = sphi 0, %s52
      %s53 = sphi 0, %s50
      %s54 = sphi 0, %s53
      %s70 = sphi 0, %s54
      %s76 = sphi 0, %s78
      %s79 = sphi 0, %s76
      %s80 = sphi 0, %s79
      %s96 = sphi 0, %s80
      %s102 = sphi 0, %s104
      %s105 = sphi 0, %s102
      %s106 = sphi 0, %s105
      %s122 = sphi 0, %s106
      %s126 = sphi 0, %s126
      %s128 = sphi 0, %s126
      %s129 = sphi 0, %s128
      %s143 = sphi 0, %s129
      %s147 = sphi 0, %s147
      %s149 = sphi 0, %s147
      %s150 = sphi 0, %s149
      %s164 = sphi 0, %s150
    $region4: #{tpu_custom_call.1} parent=1 // loop_header_branch
      %22 = sbr.rel (%p20) target = $region8
    $region5: #{tpu_custom_call.1} parent=1 // loop_body
      %s24 = ssub.s32 %s19, 1
      %s25 = ssub.s32 %s19, 2
      %s26 = sadd.s32 %s19, 1
      %s28 = sadd.s32 %s27, 1
      %p31 = scmp.eq.s32.totalorder %s19, 1
      %p32 = scmp.ne.s32.totalorder %s27, %s29
      %p33 = scmp.eq.s32.totalorder %s19, 0
      %p34 = por %p32, %p33
      %p35 = scmp.ne.s32.totalorder %s27, %s29
      %p36 = scmp.eq.s32.totalorder %s24, 1
      %p37 = por %p35, %p36
      %p38 = scmp.ne.s32.totalorder %s29, %s30
      %p39 = scmp.eq.s32.totalorder %s24, 0
      %p40 = por %p38, %p39
      %p41 = scmp.ne.s32.totalorder %s29, %s30
      %p42 = scmp.eq.s32.totalorder %s25, 1
      %p43 = por %p41, %p42
      %p45 = scmp.ne.s32.totalorder %s30, %s44
      %p46 = scmp.eq.s32.totalorder %s25, 0
      %p47 = por %p45, %p46
      %s48 = ssub.s32 %s19, %s26
      %p49 = scmp.eq.s32.totalorder %s48, 0
      %s51 = sadd.s32 %s50, 1
      %s52 = scalar_select %p49, %s50, %s51
      %p55 = pneg %p49
      %p56 = scmp.eq.s32.totalorder %s19, 1
      %p57 = por %p55, %p56
      %p58 = scmp.ne.s32.totalorder %s50, %s53
      %p59 = scmp.eq.s32.totalorder %s19, 0
      %p60 = por %p58, %p59
      %p61 = scmp.ne.s32.totalorder %s50, %s53
      %p62 = scmp.eq.s32.totalorder %s24, 1
      %p63 = por %p61, %p62
      %p64 = scmp.ne.s32.totalorder %s53, %s54
      %p65 = scmp.eq.s32.totalorder %s24, 0
      %p66 = por %p64, %p65
      %p67 = scmp.ne.s32.totalorder %s53, %s54
      %p68 = scmp.eq.s32.totalorder %s25, 1
      %p69 = por %p67, %p68
      %p71 = scmp.ne.s32.totalorder %s54, %s70
      %p72 = scmp.eq.s32.totalorder %s25, 0
      %p73 = por %p71, %p72
      %s74 = ssub.s32 %s19, %s26
      %p75 = scmp.eq.s32.totalorder %s74, 0
      %s77 = sadd.s32 %s76, 1
      %s78 = scalar_select %p75, %s76, %s77
      %p81 = pneg %p75
      %p82 = scmp.eq.s32.totalorder %s19, 1
      %p83 = por %p81, %p82
      %p84 = scmp.ne.s32.totalorder %s76, %s79
      %p85 = scmp.eq.s32.totalorder %s19, 0
      %p86 = por %p84, %p85
      %p87 = scmp.ne.s32.totalorder %s76, %s79
      %p88 = scmp.eq.s32.totalorder %s24, 1
      %p89 = por %p87, %p88
      %p90 = scmp.ne.s32.totalorder %s79, %s80
      %p91 = scmp.eq.s32.totalorder %s24, 0
      %p92 = por %p90, %p91
      %p93 = scmp.ne.s32.totalorder %s79, %s80
      %p94 = scmp.eq.s32.totalorder %s25, 1
      %p95 = por %p93, %p94
      %p97 = scmp.ne.s32.totalorder %s80, %s96
      %p98 = scmp.eq.s32.totalorder %s25, 0
      %p99 = por %p97, %p98
      %s100 = ssub.s32 %s19, %s26
      %p101 = scmp.eq.s32.totalorder %s100, 0
      %s103 = sadd.s32 %s102, 1
      %s104 = scalar_select %p101, %s102, %s103
      %p107 = pneg %p101
      %p108 = scmp.eq.s32.totalorder %s19, 1
      %p109 = por %p107, %p108
      %p110 = scmp.ne.s32.totalorder %s102, %s105
      %p111 = scmp.eq.s32.totalorder %s19, 0
      %p112 = por %p110, %p111
      %p113 = scmp.ne.s32.totalorder %s102, %s105
      %p114 = scmp.eq.s32.totalorder %s24, 1
      %p115 = por %p113, %p114
      %p116 = scmp.ne.s32.totalorder %s105, %s106
      %p117 = scmp.eq.s32.totalorder %s24, 0
      %p118 = por %p116, %p117
      %p119 = scmp.ne.s32.totalorder %s105, %s106
      %p120 = scmp.eq.s32.totalorder %s25, 1
      %p121 = por %p119, %p120
      %p123 = scmp.ne.s32.totalorder %s106, %s122
      %p124 = scmp.eq.s32.totalorder %s25, 0
      %p125 = por %p123, %p124
      %s127 = sadd.s32 %s126, 1
      %p130 = scmp.eq.s32.totalorder %s19, 1
      %p131 = scmp.ne.s32.totalorder %s126, %s128
      %p132 = scmp.eq.s32.totalorder %s19, 0
      %p133 = por %p131, %p132
      %p134 = scmp.ne.s32.totalorder %s126, %s128
      %p135 = scmp.eq.s32.totalorder %s24, 1
      %p136 = por %p134, %p135
      %p137 = scmp.ne.s32.totalorder %s128, %s129
      %p138 = scmp.eq.s32.totalorder %s24, 0
      %p139 = por %p137, %p138
      %p140 = scmp.ne.s32.totalorder %s128, %s129
      %p141 = scmp.eq.s32.totalorder %s25, 1
      %p142 = por %p140, %p141
      %p144 = scmp.ne.s32.totalorder %s129, %s143
      %p145 = scmp.eq.s32.totalorder %s25, 0
      %p146 = por %p144, %p145
      %s148 = sadd.s32 %s147, 1
      %p151 = scmp.eq.s32.totalorder %s19, 1
      %p152 = scmp.ne.s32.totalorder %s147, %s149
      %p153 = scmp.eq.s32.totalorder %s19, 0
      %p154 = por %p152, %p153
      %p155 = scmp.ne.s32.totalorder %s147, %s149
      %p156 = scmp.eq.s32.totalorder %s24, 1
      %p157 = por %p155, %p156
      %p158 = scmp.ne.s32.totalorder %s149, %s150
      %p159 = scmp.eq.s32.totalorder %s24, 0
      %p160 = por %p158, %p159
      %p161 = scmp.ne.s32.totalorder %s149, %s150
      %p162 = scmp.eq.s32.totalorder %s25, 1
      %p163 = por %p161, %p162
      %p165 = scmp.ne.s32.totalorder %s150, %s164
      %p166 = scmp.eq.s32.totalorder %s25, 0
      %p167 = por %p165, %p166
      %p168 = scmp.le.s32.totalorder 1, %s19
      %p169 = scmp.lt.s32.totalorder %s19, 3
      %p170 = pnand %p168, %p169
      %p171 = pneg %p170
      // Predicated region
      $region9: #{tpu_custom_call.1} parent=5 // pred_check
        _
      $region10: #{tpu_custom_call.1} parent=5 // pred_check_branch
        %173 = sbr.rel (%p170) target = $region12
      $region11: #{tpu_custom_call.1} parent=5 // pred_region
        %s174 = ssub.s32 %s19, 1
        // Predicated region
        $region13: #{tpu_custom_call.1} parent=11 // pred_check
          %p175 = pneg %p40
        $region14: #{tpu_custom_call.1} parent=11 // pred_check_branch
          %177 = sbr.rel (%p175) target = $region16
        $region15: #{tpu_custom_call.1} parent=11 // pred_region
          %s179 = ssub.s32 128, 128
          %180 = vsyncadd [#allocation3], %s179
          %s181 = sshll.u32 [#allocation2], 4
          %s182 = int_to_ptr.vmem [resolvable:$true] %s181
          %187 = dma.hbm_to_vmem [thread:$0]  %s0, 128, %s182, [#allocation3], 64, 64, 4
        $region16: #{tpu_custom_call.1} parent=11 // pred_fallthru
          _
        // Predicated region
        $region17: #{tpu_custom_call.1} parent=11 // pred_check
          %p188 = pneg %p139
        $region18: #{tpu_custom_call.1} parent=11 // pred_check_branch
          %190 = sbr.rel (%p188) target = $region20
        $region19: #{tpu_custom_call.1} parent=11 // pred_region
          _
        $region20: #{tpu_custom_call.1} parent=11 // pred_fallthru
          _
      $region12: #{tpu_custom_call.1} parent=5 // pred_fallthru
        _
      %p191 = scmp.lt.s32.totalorder %s19, 2
      // Predicated region
      $region21: #{tpu_custom_call.1} parent=5 // pred_check
        %p192 = pneg %p191
      $region22: #{tpu_custom_call.1} parent=5 // pred_check_branch
        %194 = sbr.rel (%p192) target = $region24
      $region23: #{tpu_custom_call.1} parent=5 // pred_region
        // Predicated region
        $region25: #{tpu_custom_call.1} parent=23 // pred_check
          %p195 = pneg %p60
        $region26: #{tpu_custom_call.1} parent=23 // pred_check_branch
          %197 = sbr.rel (%p195) target = $region28
        $region27: #{tpu_custom_call.1} parent=23 // pred_region
          %s198 = sand.u32 %s19, 1
          %s199 = scalar_lea.sflag [#allocation6], %s198
          %s200 = sand.u32 %s50, 1
          %s201 = smul.addr %s200, 1024
          %s202 = scalar_lea.vmem [#allocation5], %s201
          %s203 = smul.u32 16, %s19
          %s205 = ssub.s32 16384, 16384
          %206 = vsyncadd %s199, %s205
          %s207 = smul.addr %s203, 64
          %s208 = scalar_lea.hbm %s1, %s207
          %s209 = sshll.u32 %s202, 4
          %s210 = int_to_ptr.vmem [resolvable:$true] %s209
          %215 = dma.hbm_to_vmem [thread:$0]  %s208, 16384, %s210, %s199, 2048, 1024, 64
        $region28: #{tpu_custom_call.1} parent=23 // pred_fallthru
          _
        // Predicated region
        $region29: #{tpu_custom_call.1} parent=23 // pred_check
          %p216 = pneg %p86
        $region30: #{tpu_custom_call.1} parent=23 // pred_check_branch
          %218 = sbr.rel (%p216) target = $region32
        $region31: #{tpu_custom_call.1} parent=23 // pred_region
          %s219 = sand.u32 %s19, 1
          %s220 = scalar_lea.sflag [#allocation6], %s219
          %s221 = sand.u32 %s76, 1
          %s222 = smul.addr %s221, 16
          %s223 = scalar_lea.vmem [#allocation7], %s222
          %s224 = smul.u32 16, %s19
          %s226 = ssub.s32 256, 256
          %227 = vsyncadd %s220, %s226
          %s228 = smul.addr %s224, 16
          %s229 = scalar_lea.hbm %s2, %s228
          %s231 = sshll.u32 %s223, 4
          %s232 = int_to_ptr.vmem [resolvable:$true] %s231
          %234 = dma.hbm_to_vmem [thread:$0]  %s229, 256, %s232, %s220
        $region32: #{tpu_custom_call.1} parent=23 // pred_fallthru
          _
        // Predicated region
        $region33: #{tpu_custom_call.1} parent=23 // pred_check
          %p235 = pneg %p112
        $region34: #{tpu_custom_call.1} parent=23 // pred_check_branch
          %237 = sbr.rel (%p235) target = $region36
        $region35: #{tpu_custom_call.1} parent=23 // pred_region
          %s238 = sand.u32 %s102, 1
          %s239 = scalar_lea.sflag [#allocation9], %s238
          %s240 = sand.u32 %s102, 1
          %s241 = smul.addr %s240, 1024
          %s242 = scalar_lea.vmem [#allocation8], %s241
          %s243 = smul.u32 256, %s19
          %s245 = ssub.s32 16384, 16384
          %246 = vsyncadd %s239, %s245
          %s247 = smul.addr %s243, 64
          %s248 = scalar_lea.hbm %s3, %s247
          %s249 = sshll.u32 %s242, 4
          %s250 = int_to_ptr.vmem [resolvable:$true] %s249
          %255 = dma.hbm_to_vmem [thread:$0]  %s248, 16384, %s250, %s239, 64, 64, 4
        $region36: #{tpu_custom_call.1} parent=23 // pred_fallthru
          _
      $region24: #{tpu_custom_call.1} parent=5 // pred_fallthru
        _
      %p256 = scmp.le.s32.totalorder 1, %s19
      %p257 = scmp.lt.s32.totalorder %s19, 3
      %p258 = pnand %p256, %p257
      %p259 = pneg %p258
      // Predicated region
      $region37: #{tpu_custom_call.1} parent=5 // pred_check
        _
      $region38: #{tpu_custom_call.1} parent=5 // pred_check_branch
        %261 = sbr.rel (%p258) target = $region40
      $region39: #{tpu_custom_call.1} parent=5 // pred_region
        %s262 = ssub.s32 %s19, 1
        // Predicated region
        $region41: #{tpu_custom_call.1} parent=39 // pred_check
          %p263 = pneg %p40
        $region42: #{tpu_custom_call.1} parent=39 // pred_check_branch
          %265 = sbr.rel (%p263) target = $region44
        $region43: #{tpu_custom_call.1} parent=39 // pred_region
          %266 = dma.done [#allocation3], 128
        $region44: #{tpu_custom_call.1} parent=39 // pred_fallthru
          _
        %s267 = sand.u32 %s24, 1
        %s268 = scalar_lea.sflag [#allocation6], %s267
        %s269 = sand.u32 %s53, 1
        %s270 = smul.addr %s269, 1024
        %s271 = scalar_lea.vmem [#allocation5], %s270
        // Predicated region
        $region45: #{tpu_custom_call.1} parent=39 // pred_check
          %p272 = pneg %p66
        $region46: #{tpu_custom_call.1} parent=39 // pred_check_branch
          %274 = sbr.rel (%p272) target = $region48
        $region47: #{tpu_custom_call.1} parent=39 // pred_region
          %275 = dma.done %s268, 16384
        $region48: #{tpu_custom_call.1} parent=39 // pred_fallthru
          _
        %s276 = sand.u32 %s24, 1
        %s277 = scalar_lea.sflag [#allocation6], %s276
        %s278 = sand.u32 %s79, 1
        %s279 = smul.addr %s278, 16
        %s280 = scalar_lea.vmem [#allocation7], %s279
        // Predicated region
        $region49: #{tpu_custom_call.1} parent=39 // pred_check
          %p281 = pneg %p92
        $region50: #{tpu_custom_call.1} parent=39 // pred_check_branch
          %283 = sbr.rel (%p281) target = $region52
        $region51: #{tpu_custom_call.1} parent=39 // pred_region
          %284 = dma.done %s277, 256
        $region52: #{tpu_custom_call.1} parent=39 // pred_fallthru
          _
        %s285 = sand.u32 %s105, 1
        %s286 = scalar_lea.sflag [#allocation9], %s285
        %s287 = sand.u32 %s105, 1
        %s288 = smul.addr %s287, 1024
        %s289 = scalar_lea.vmem [#allocation8], %s288
        // Predicated region
        $region53: #{tpu_custom_call.1} parent=39 // pred_check
          %p290 = pneg %p118
        $region54: #{tpu_custom_call.1} parent=39 // pred_check_branch
          %292 = sbr.rel (%p290) target = $region56
        $region55: #{tpu_custom_call.1} parent=39 // pred_region
          %293 = dma.done %s286, 16384
        $region56: #{tpu_custom_call.1} parent=39 // pred_fallthru
          _
        %p294 = pneg %p40
        %p295 = pneg %p37
        %s296 = sand.u32 %s24, 1
        %s297 = scalar_lea.sflag [#allocation6], %s296
        %s298 = sand.u32 %s53, 1
        %s299 = smul.addr %s298, 1024
        %s300 = scalar_lea.vmem [#allocation5], %s299
        %p301 = pneg %p66
        %p302 = pneg %p63
        %s303 = sand.u32 %s24, 1
        %s304 = scalar_lea.sflag [#allocation6], %s303
        %s305 = sand.u32 %s79, 1
        %s306 = smul.addr %s305, 16
        %s307 = scalar_lea.vmem [#allocation7], %s306
        %p308 = pneg %p92
        %p309 = pneg %p89
        %s310 = sand.u32 %s105, 1
        %s311 = scalar_lea.sflag [#allocation9], %s310
        %s312 = sand.u32 %s105, 1
        %s313 = smul.addr %s312, 1024
        %s314 = scalar_lea.vmem [#allocation8], %s313
        %p315 = pneg %p118
        %p316 = pneg %p115
        %p317 = pneg %p139
        %p318 = pneg %p136
        %p319 = pneg %p160
        %p320 = pneg %p157
        %s321 = smul.u32 16, %s24
        %s322 = smul.u32 16, %s24
        %s323 = smul.u32 256, %s24
        %v325 = vld [vmem:[#allocation2] sm:$0xf]
        %v326 = vld [vmem:[#allocation2 + $0x4] sm:$0xf]
        %v327 = vld [vmem:[%s271] sm:$0xff]
        %v328 = vld [vmem:[%s271 + $0x8] sm:$0xff]
        %v329 = vld [vmem:[%s271 + $0x10] sm:$0xff]
        %v330 = vld [vmem:[%s271 + $0x18] sm:$0xff]
        %v331 = vld [vmem:[%s271 + $0x20] sm:$0xff]
        %v332 = vld [vmem:[%s271 + $0x28] sm:$0xff]
        %v333 = vld [vmem:[%s271 + $0x30] sm:$0xff]
        %v334 = vld [vmem:[%s271 + $0x38] sm:$0xff]
        %v335 = vld [vmem:[%s271 + $0x40] sm:$0xff]
        %v336 = vld [vmem:[%s271 + $0x48] sm:$0xff]
        %v337 = vld [vmem:[%s271 + $0x50] sm:$0xff]
        %v338 = vld [vmem:[%s271 + $0x58] sm:$0xff]
        %v339 = vld [vmem:[%s271 + $0x60] sm:$0xff]
        %v340 = vld [vmem:[%s271 + $0x68] sm:$0xff]
        %v341 = vld [vmem:[%s271 + $0x70] sm:$0xff]
        %v342 = vld [vmem:[%s271 + $0x78] sm:$0xff]
        %v343 = vld [vmem:[%s271 + $0x80] sm:$0xff]
        %v344 = vld [vmem:[%s271 + $0x88] sm:$0xff]
        %v345 = vld [vmem:[%s271 + $0x90] sm:$0xff]
        %v346 = vld [vmem:[%s271 + $0x98] sm:$0xff]
        %v347 = vld [vmem:[%s271 + $0xa0] sm:$0xff]
        %v348 = vld [vmem:[%s271 + $0xa8] sm:$0xff]
        %v349 = vld [vmem:[%s271 + $0xb0] sm:$0xff]
        %v350 = vld [vmem:[%s271 + $0xb8] sm:$0xff]
        %v351 = vld [vmem:[%s271 + $0xc0] sm:$0xff]
        %v352 = vld [vmem:[%s271 + $0xc8] sm:$0xff]
        %v353 = vld [vmem:[%s271 + $0xd0] sm:$0xff]
        %v354 = vld [vmem:[%s271 + $0xd8] sm:$0xff]
        %v355 = vld [vmem:[%s271 + $0xe0] sm:$0xff]
        %v356 = vld [vmem:[%s271 + $0xe8] sm:$0xff]
        %v357 = vld [vmem:[%s271 + $0xf0] sm:$0xff]
        %v358 = vld [vmem:[%s271 + $0xf8] sm:$0xff]
        %v359 = vld [vmem:[%s271 + $0x100] sm:$0xff]
        %v360 = vld [vmem:[%s271 + $0x108] sm:$0xff]
        %v361 = vld [vmem:[%s271 + $0x110] sm:$0xff]
        %v362 = vld [vmem:[%s271 + $0x118] sm:$0xff]
        %v363 = vld [vmem:[%s271 + $0x120] sm:$0xff]
        %v364 = vld [vmem:[%s271 + $0x128] sm:$0xff]
        %v365 = vld [vmem:[%s271 + $0x130] sm:$0xff]
        %v366 = vld [vmem:[%s271 + $0x138] sm:$0xff]
        %v367 = vld [vmem:[%s271 + $0x140] sm:$0xff]
        %v368 = vld [vmem:[%s271 + $0x148] sm:$0xff]
        %v369 = vld [vmem:[%s271 + $0x150] sm:$0xff]
        %v370 = vld [vmem:[%s271 + $0x158] sm:$0xff]
        %v371 = vld [vmem:[%s271 + $0x160] sm:$0xff]
        %v372 = vld [vmem:[%s271 + $0x168] sm:$0xff]
        %v373 = vld [vmem:[%s271 + $0x170] sm:$0xff]
        %v374 = vld [vmem:[%s271 + $0x178] sm:$0xff]
        %v375 = vld [vmem:[%s271 + $0x180] sm:$0xff]
        %v376 = vld [vmem:[%s271 + $0x188] sm:$0xff]
        %v377 = vld [vmem:[%s271 + $0x190] sm:$0xff]
        %v378 = vld [vmem:[%s271 + $0x198] sm:$0xff]
        %v379 = vld [vmem:[%s271 + $0x1a0] sm:$0xff]
        %v380 = vld [vmem:[%s271 + $0x1a8] sm:$0xff]
        %v381 = vld [vmem:[%s271 + $0x1b0] sm:$0xff]
        %v382 = vld [vmem:[%s271 + $0x1b8] sm:$0xff]
        %v383 = vld [vmem:[%s271 + $0x1c0] sm:$0xff]
        %v384 = vld [vmem:[%s271 + $0x1c8] sm:$0xff]
        %v385 = vld [vmem:[%s271 + $0x1d0] sm:$0xff]
        %v386 = vld [vmem:[%s271 + $0x1d8] sm:$0xff]
        %v387 = vld [vmem:[%s271 + $0x1e0] sm:$0xff]
        %v388 = vld [vmem:[%s271 + $0x1e8] sm:$0xff]
        %v389 = vld [vmem:[%s271 + $0x1f0] sm:$0xff]
        %v390 = vld [vmem:[%s271 + $0x1f8] sm:$0xff]
        %v391 = vld [vmem:[%s271 + $0x200] sm:$0xff]
        %v392 = vld [vmem:[%s271 + $0x208] sm:$0xff]
        %v393 = vld [vmem:[%s271 + $0x210] sm:$0xff]
        %v394 = vld [vmem:[%s271 + $0x218] sm:$0xff]
        %v395 = vld [vmem:[%s271 + $0x220] sm:$0xff]
        %v396 = vld [vmem:[%s271 + $0x228] sm:$0xff]
        %v397 = vld [vmem:[%s271 + $0x230] sm:$0xff]
        %v398 = vld [vmem:[%s271 + $0x238] sm:$0xff]
        %v399 = vld [vmem:[%s271 + $0x240] sm:$0xff]
        %v400 = vld [vmem:[%s271 + $0x248] sm:$0xff]
        %v401 = vld [vmem:[%s271 + $0x250] sm:$0xff]
        %v402 = vld [vmem:[%s271 + $0x258] sm:$0xff]
        %v403 = vld [vmem:[%s271 + $0x260] sm:$0xff]
        %v404 = vld [vmem:[%s271 + $0x268] sm:$0xff]
        %v405 = vld [vmem:[%s271 + $0x270] sm:$0xff]
        %v406 = vld [vmem:[%s271 + $0x278] sm:$0xff]
        %v407 = vld [vmem:[%s271 + $0x280] sm:$0xff]
        %v408 = vld [vmem:[%s271 + $0x288] sm:$0xff]
        %v409 = vld [vmem:[%s271 + $0x290] sm:$0xff]
        %v410 = vld [vmem:[%s271 + $0x298] sm:$0xff]
        %v411 = vld [vmem:[%s271 + $0x2a0] sm:$0xff]
        %v412 = vld [vmem:[%s271 + $0x2a8] sm:$0xff]
        %v413 = vld [vmem:[%s271 + $0x2b0] sm:$0xff]
        %v414 = vld [vmem:[%s271 + $0x2b8] sm:$0xff]
        %v415 = vld [vmem:[%s271 + $0x2c0] sm:$0xff]
        %v416 = vld [vmem:[%s271 + $0x2c8] sm:$0xff]
        %v417 = vld [vmem:[%s271 + $0x2d0] sm:$0xff]
        %v418 = vld [vmem:[%s271 + $0x2d8] sm:$0xff]
        %v419 = vld [vmem:[%s271 + $0x2e0] sm:$0xff]
        %v420 = vld [vmem:[%s271 + $0x2e8] sm:$0xff]
        %v421 = vld [vmem:[%s271 + $0x2f0] sm:$0xff]
        %v422 = vld [vmem:[%s271 + $0x2f8] sm:$0xff]
        %v423 = vld [vmem:[%s271 + $0x300] sm:$0xff]
        %v424 = vld [vmem:[%s271 + $0x308] sm:$0xff]
        %v425 = vld [vmem:[%s271 + $0x310] sm:$0xff]
        %v426 = vld [vmem:[%s271 + $0x318] sm:$0xff]
        %v427 = vld [vmem:[%s271 + $0x320] sm:$0xff]
        %v428 = vld [vmem:[%s271 + $0x328] sm:$0xff]
        %v429 = vld [vmem:[%s271 + $0x330] sm:$0xff]
        %v430 = vld [vmem:[%s271 + $0x338] sm:$0xff]
        %v431 = vld [vmem:[%s271 + $0x340] sm:$0xff]
        %v432 = vld [vmem:[%s271 + $0x348] sm:$0xff]
        %v433 = vld [vmem:[%s271 + $0x350] sm:$0xff]
        %v434 = vld [vmem:[%s271 + $0x358] sm:$0xff]
        %v435 = vld [vmem:[%s271 + $0x360] sm:$0xff]
        %v436 = vld [vmem:[%s271 + $0x368] sm:$0xff]
        %v437 = vld [vmem:[%s271 + $0x370] sm:$0xff]
        %v438 = vld [vmem:[%s271 + $0x378] sm:$0xff]
        %v439 = vld [vmem:[%s271 + $0x380] sm:$0xff]
        %v440 = vld [vmem:[%s271 + $0x388] sm:$0xff]
        %v441 = vld [vmem:[%s271 + $0x390] sm:$0xff]
        %v442 = vld [vmem:[%s271 + $0x398] sm:$0xff]
        %v443 = vld [vmem:[%s271 + $0x3a0] sm:$0xff]
        %v444 = vld [vmem:[%s271 + $0x3a8] sm:$0xff]
        %v445 = vld [vmem:[%s271 + $0x3b0] sm:$0xff]
        %v446 = vld [vmem:[%s271 + $0x3b8] sm:$0xff]
        %v447 = vld [vmem:[%s271 + $0x3c0] sm:$0xff]
        %v448 = vld [vmem:[%s271 + $0x3c8] sm:$0xff]
        %v449 = vld [vmem:[%s271 + $0x3d0] sm:$0xff]
        %v450 = vld [vmem:[%s271 + $0x3d8] sm:$0xff]
        %v451 = vld [vmem:[%s271 + $0x3e0] sm:$0xff]
        %v452 = vld [vmem:[%s271 + $0x3e8] sm:$0xff]
        %v453 = vld [vmem:[%s271 + $0x3f0] sm:$0xff]
        %v454 = vld [vmem:[%s271 + $0x3f8] sm:$0xff]
        %v455 = vld [vmem:[%s280] sm:$0xff]
        %v456 = vld [vmem:[%s280 + $0x8] sm:$0xff]
        %v459 = vlaneseq
        %v460 = vshrl.u32 %v459, 7
        %v461 = vsub.s32 0, %v460
        %v462 = vrot.slane %v455, %v461
        %v463 = vlaneseq
        %v464 = vshrl.u32 %v463, 7
        %v465 = vsub.s32 1, %v464
        %v466 = vrot.slane %v455, %v465
        %v467 = vlaneseq
        %v468 = vshrl.u32 %v467, 7
        %v469 = vsub.s32 2, %v468
        %v470 = vrot.slane %v455, %v469
        %v471 = vlaneseq
        %v472 = vshrl.u32 %v471, 7
        %v473 = vsub.s32 3, %v472
        %v474 = vrot.slane %v455, %v473
        %v475 = vlaneseq
        %v476 = vshrl.u32 %v475, 7
        %v477 = vsub.s32 4, %v476
        %v478 = vrot.slane %v455, %v477
        %v479 = vlaneseq
        %v480 = vshrl.u32 %v479, 7
        %v481 = vsub.s32 5, %v480
        %v482 = vrot.slane %v455, %v481
        %v483 = vlaneseq
        %v484 = vshrl.u32 %v483, 7
        %v485 = vsub.s32 6, %v484
        %v486 = vrot.slane %v455, %v485
        %v487 = vlaneseq
        %v488 = vshrl.u32 %v487, 7
        %v489 = vsub.s32 7, %v488
        %v490 = vrot.slane %v455, %v489
        %v491 = vlaneseq
        %v492 = vshrl.u32 %v491, 7
        %v493 = vsub.s32 0, %v492
        %v494 = vrot.slane %v456, %v493
        %v495 = vlaneseq
        %v496 = vshrl.u32 %v495, 7
        %v497 = vsub.s32 1, %v496
        %v498 = vrot.slane %v456, %v497
        %v499 = vlaneseq
        %v500 = vshrl.u32 %v499, 7
        %v501 = vsub.s32 2, %v500
        %v502 = vrot.slane %v456, %v501
        %v503 = vlaneseq
        %v504 = vshrl.u32 %v503, 7
        %v505 = vsub.s32 3, %v504
        %v506 = vrot.slane %v456, %v505
        %v507 = vlaneseq
        %v508 = vshrl.u32 %v507, 7
        %v509 = vsub.s32 4, %v508
        %v510 = vrot.slane %v456, %v509
        %v511 = vlaneseq
        %v512 = vshrl.u32 %v511, 7
        %v513 = vsub.s32 5, %v512
        %v514 = vrot.slane %v456, %v513
        %v515 = vlaneseq
        %v516 = vshrl.u32 %v515, 7
        %v517 = vsub.s32 6, %v516
        %v518 = vrot.slane %v456, %v517
        %v519 = vlaneseq
        %v520 = vshrl.u32 %v519, 7
        %v521 = vsub.s32 7, %v520
        %v522 = vrot.slane %v456, %v521
        %v541 = vunpack.c.l.b16 %v325
        %v542 = vunpack.c.l.b16 %v326
        %v543 = vpack.c.b16 %v542, %v541
        %v673 = vunpack.c.l.b16 %v327
        %v674 = vunpack.c.h.b16 %v327
        %v675 = vunpack.c.l.b16 %v328
        %v676 = vunpack.c.h.b16 %v328
        %v677 = vunpack.c.l.b16 %v329
        %v678 = vunpack.c.h.b16 %v329
        %v679 = vunpack.c.l.b16 %v330
        %v680 = vunpack.c.h.b16 %v330
        %v681 = vunpack.c.l.b16 %v331
        %v682 = vunpack.c.h.b16 %v331
        %v683 = vunpack.c.l.b16 %v332
        %v684 = vunpack.c.h.b16 %v332
        %v685 = vunpack.c.l.b16 %v333
        %v686 = vunpack.c.h.b16 %v333
        %v687 = vunpack.c.l.b16 %v334
        %v688 = vunpack.c.h.b16 %v334
        %v689 = vunpack.c.l.b16 %v335
        %v690 = vunpack.c.h.b16 %v335
        %v691 = vunpack.c.l.b16 %v336
        %v692 = vunpack.c.h.b16 %v336
        %v693 = vunpack.c.l.b16 %v337
        %v694 = vunpack.c.h.b16 %v337
        %v695 = vunpack.c.l.b16 %v338
        %v696 = vunpack.c.h.b16 %v338
        %v697 = vunpack.c.l.b16 %v339
        %v698 = vunpack.c.h.b16 %v339
        %v699 = vunpack.c.l.b16 %v340
        %v700 = vunpack.c.h.b16 %v340
        %v701 = vunpack.c.l.b16 %v341
        %v702 = vunpack.c.h.b16 %v341
        %v703 = vunpack.c.l.b16 %v342
        %v704 = vunpack.c.h.b16 %v342
        %v705 = vunpack.c.l.b16 %v343
        %v706 = vunpack.c.h.b16 %v343
        %v707 = vunpack.c.l.b16 %v344
        %v708 = vunpack.c.h.b16 %v344
        %v709 = vunpack.c.l.b16 %v345
        %v710 = vunpack.c.h.b16 %v345
        %v711 = vunpack.c.l.b16 %v346
        %v712 = vunpack.c.h.b16 %v346
        %v713 = vunpack.c.l.b16 %v347
        %v714 = vunpack.c.h.b16 %v347
        %v715 = vunpack.c.l.b16 %v348
        %v716 = vunpack.c.h.b16 %v348
        %v717 = vunpack.c.l.b16 %v349
        %v718 = vunpack.c.h.b16 %v349
        %v719 = vunpack.c.l.b16 %v350
        %v720 = vunpack.c.h.b16 %v350
        %v721 = vunpack.c.l.b16 %v351
        %v722 = vunpack.c.h.b16 %v351
        %v723 = vunpack.c.l.b16 %v352
        %v724 = vunpack.c.h.b16 %v352
        %v725 = vunpack.c.l.b16 %v353
        %v726 = vunpack.c.h.b16 %v353
        %v727 = vunpack.c.l.b16 %v354
        %v728 = vunpack.c.h.b16 %v354
        %v729 = vunpack.c.l.b16 %v355
        %v730 = vunpack.c.h.b16 %v355
        %v731 = vunpack.c.l.b16 %v356
        %v732 = vunpack.c.h.b16 %v356
        %v733 = vunpack.c.l.b16 %v357
        %v734 = vunpack.c.h.b16 %v357
        %v735 = vunpack.c.l.b16 %v358
        %v736 = vunpack.c.h.b16 %v358
        %v737 = vunpack.c.l.b16 %v359
        %v738 = vunpack.c.h.b16 %v359
        %v739 = vunpack.c.l.b16 %v360
        %v740 = vunpack.c.h.b16 %v360
        %v741 = vunpack.c.l.b16 %v361
        %v742 = vunpack.c.h.b16 %v361
        %v743 = vunpack.c.l.b16 %v362
        %v744 = vunpack.c.h.b16 %v362
        %v745 = vunpack.c.l.b16 %v363
        %v746 = vunpack.c.h.b16 %v363
        %v747 = vunpack.c.l.b16 %v364
        %v748 = vunpack.c.h.b16 %v364
        %v749 = vunpack.c.l.b16 %v365
        %v750 = vunpack.c.h.b16 %v365
        %v751 = vunpack.c.l.b16 %v366
        %v752 = vunpack.c.h.b16 %v366
        %v753 = vunpack.c.l.b16 %v367
        %v754 = vunpack.c.h.b16 %v367
        %v755 = vunpack.c.l.b16 %v368
        %v756 = vunpack.c.h.b16 %v368
        %v757 = vunpack.c.l.b16 %v369
        %v758 = vunpack.c.h.b16 %v369
        %v759 = vunpack.c.l.b16 %v370
        %v760 = vunpack.c.h.b16 %v370
        %v761 = vunpack.c.l.b16 %v371
        %v762 = vunpack.c.h.b16 %v371
        %v763 = vunpack.c.l.b16 %v372
        %v764 = vunpack.c.h.b16 %v372
        %v765 = vunpack.c.l.b16 %v373
        %v766 = vunpack.c.h.b16 %v373
        %v767 = vunpack.c.l.b16 %v374
        %v768 = vunpack.c.h.b16 %v374
        %v769 = vunpack.c.l.b16 %v375
        %v770 = vunpack.c.h.b16 %v375
        %v771 = vunpack.c.l.b16 %v376
        %v772 = vunpack.c.h.b16 %v376
        %v773 = vunpack.c.l.b16 %v377
        %v774 = vunpack.c.h.b16 %v377
        %v775 = vunpack.c.l.b16 %v378
        %v776 = vunpack.c.h.b16 %v378
        %v777 = vunpack.c.l.b16 %v379
        %v778 = vunpack.c.h.b16 %v379
        %v779 = vunpack.c.l.b16 %v380
        %v780 = vunpack.c.h.b16 %v380
        %v781 = vunpack.c.l.b16 %v381
        %v782 = vunpack.c.h.b16 %v381
        %v783 = vunpack.c.l.b16 %v382
        %v784 = vunpack.c.h.b16 %v382
        %v785 = vunpack.c.l.b16 %v383
        %v786 = vunpack.c.h.b16 %v383
        %v787 = vunpack.c.l.b16 %v384
        %v788 = vunpack.c.h.b16 %v384
        %v789 = vunpack.c.l.b16 %v385
        %v790 = vunpack.c.h.b16 %v385
        %v791 = vunpack.c.l.b16 %v386
        %v792 = vunpack.c.h.b16 %v386
        %v793 = vunpack.c.l.b16 %v387
        %v794 = vunpack.c.h.b16 %v387
        %v795 = vunpack.c.l.b16 %v388
        %v796 = vunpack.c.h.b16 %v388
        %v797 = vunpack.c.l.b16 %v389
        %v798 = vunpack.c.h.b16 %v389
        %v799 = vunpack.c.l.b16 %v390
        %v800 = vunpack.c.h.b16 %v390
        %v801 = vunpack.c.l.b16 %v391
        %v802 = vunpack.c.h.b16 %v391
        %v803 = vunpack.c.l.b16 %v392
        %v804 = vunpack.c.h.b16 %v392
        %v805 = vunpack.c.l.b16 %v393
        %v806 = vunpack.c.h.b16 %v393
        %v807 = vunpack.c.l.b16 %v394
        %v808 = vunpack.c.h.b16 %v394
        %v809 = vunpack.c.l.b16 %v395
        %v810 = vunpack.c.h.b16 %v395
        %v811 = vunpack.c.l.b16 %v396
        %v812 = vunpack.c.h.b16 %v396
        %v813 = vunpack.c.l.b16 %v397
        %v814 = vunpack.c.h.b16 %v397
        %v815 = vunpack.c.l.b16 %v398
        %v816 = vunpack.c.h.b16 %v398
        %v817 = vunpack.c.l.b16 %v399
        %v818 = vunpack.c.h.b16 %v399
        %v819 = vunpack.c.l.b16 %v400
        %v820 = vunpack.c.h.b16 %v400
        %v821 = vunpack.c.l.b16 %v401
        %v822 = vunpack.c.h.b16 %v401
        %v823 = vunpack.c.l.b16 %v402
        %v824 = vunpack.c.h.b16 %v402
        %v825 = vunpack.c.l.b16 %v403
        %v826 = vunpack.c.h.b16 %v403
        %v827 = vunpack.c.l.b16 %v404
        %v828 = vunpack.c.h.b16 %v404
        %v829 = vunpack.c.l.b16 %v405
        %v830 = vunpack.c.h.b16 %v405
        %v831 = vunpack.c.l.b16 %v406
        %v832 = vunpack.c.h.b16 %v406
        %v833 = vunpack.c.l.b16 %v407
        %v834 = vunpack.c.h.b16 %v407
        %v835 = vunpack.c.l.b16 %v408
        %v836 = vunpack.c.h.b16 %v408
        %v837 = vunpack.c.l.b16 %v409
        %v838 = vunpack.c.h.b16 %v409
        %v839 = vunpack.c.l.b16 %v410
        %v840 = vunpack.c.h.b16 %v410
        %v841 = vunpack.c.l.b16 %v411
        %v842 = vunpack.c.h.b16 %v411
        %v843 = vunpack.c.l.b16 %v412
        %v844 = vunpack.c.h.b16 %v412
        %v845 = vunpack.c.l.b16 %v413
        %v846 = vunpack.c.h.b16 %v413
        %v847 = vunpack.c.l.b16 %v414
        %v848 = vunpack.c.h.b16 %v414
        %v849 = vunpack.c.l.b16 %v415
        %v850 = vunpack.c.h.b16 %v415
        %v851 = vunpack.c.l.b16 %v416
        %v852 = vunpack.c.h.b16 %v416
        %v853 = vunpack.c.l.b16 %v417
        %v854 = vunpack.c.h.b16 %v417
        %v855 = vunpack.c.l.b16 %v418
        %v856 = vunpack.c.h.b16 %v418
        %v857 = vunpack.c.l.b16 %v419
        %v858 = vunpack.c.h.b16 %v419
        %v859 = vunpack.c.l.b16 %v420
        %v860 = vunpack.c.h.b16 %v420
        %v861 = vunpack.c.l.b16 %v421
        %v862 = vunpack.c.h.b16 %v421
        %v863 = vunpack.c.l.b16 %v422
        %v864 = vunpack.c.h.b16 %v422
        %v865 = vunpack.c.l.b16 %v423
        %v866 = vunpack.c.h.b16 %v423
        %v867 = vunpack.c.l.b16 %v424
        %v868 = vunpack.c.h.b16 %v424
        %v869 = vunpack.c.l.b16 %v425
        %v870 = vunpack.c.h.b16 %v425
        %v871 = vunpack.c.l.b16 %v426
        %v872 = vunpack.c.h.b16 %v426
        %v873 = vunpack.c.l.b16 %v427
        %v874 = vunpack.c.h.b16 %v427
        %v875 = vunpack.c.l.b16 %v428
        %v876 = vunpack.c.h.b16 %v428
        %v877 = vunpack.c.l.b16 %v429
        %v878 = vunpack.c.h.b16 %v429
        %v879 = vunpack.c.l.b16 %v430
        %v880 = vunpack.c.h.b16 %v430
        %v881 = vunpack.c.l.b16 %v431
        %v882 = vunpack.c.h.b16 %v431
        %v883 = vunpack.c.l.b16 %v432
        %v884 = vunpack.c.h.b16 %v432
        %v885 = vunpack.c.l.b16 %v433
        %v886 = vunpack.c.h.b16 %v433
        %v887 = vunpack.c.l.b16 %v434
        %v888 = vunpack.c.h.b16 %v434
        %v889 = vunpack.c.l.b16 %v435
        %v890 = vunpack.c.h.b16 %v435
        %v891 = vunpack.c.l.b16 %v436
        %v892 = vunpack.c.h.b16 %v436
        %v893 = vunpack.c.l.b16 %v437
        %v894 = vunpack.c.h.b16 %v437
        %v895 = vunpack.c.l.b16 %v438
        %v896 = vunpack.c.h.b16 %v438
        %v897 = vunpack.c.l.b16 %v439
        %v898 = vunpack.c.h.b16 %v439
        %v899 = vunpack.c.l.b16 %v440
        %v900 = vunpack.c.h.b16 %v440
        %v901 = vunpack.c.l.b16 %v441
        %v902 = vunpack.c.h.b16 %v441
        %v903 = vunpack.c.l.b16 %v442
        %v904 = vunpack.c.h.b16 %v442
        %v905 = vunpack.c.l.b16 %v443
        %v906 = vunpack.c.h.b16 %v443
        %v907 = vunpack.c.l.b16 %v444
        %v908 = vunpack.c.h.b16 %v444
        %v909 = vunpack.c.l.b16 %v445
        %v910 = vunpack.c.h.b16 %v445
        %v911 = vunpack.c.l.b16 %v446
        %v912 = vunpack.c.h.b16 %v446
        %v913 = vunpack.c.l.b16 %v447
        %v914 = vunpack.c.h.b16 %v447
        %v915 = vunpack.c.l.b16 %v448
        %v916 = vunpack.c.h.b16 %v448
        %v917 = vunpack.c.l.b16 %v449
        %v918 = vunpack.c.h.b16 %v449
        %v919 = vunpack.c.l.b16 %v450
        %v920 = vunpack.c.h.b16 %v450
        %v921 = vunpack.c.l.b16 %v451
        %v922 = vunpack.c.h.b16 %v451
        %v923 = vunpack.c.l.b16 %v452
        %v924 = vunpack.c.h.b16 %v452
        %v925 = vunpack.c.l.b16 %v453
        %v926 = vunpack.c.h.b16 %v453
        %v927 = vunpack.c.l.b16 %v454
        %v928 = vunpack.c.h.b16 %v454
        %v929 = vpack.c.b16 %v689, %v673
        %v930 = vpack.c.b16 %v690, %v674
        %v931 = vpack.c.b16 %v691, %v675
        %v932 = vpack.c.b16 %v692, %v676
        %v933 = vpack.c.b16 %v693, %v677
        %v934 = vpack.c.b16 %v694, %v678
        %v935 = vpack.c.b16 %v695, %v679
        %v936 = vpack.c.b16 %v696, %v680
        %v937 = vpack.c.b16 %v697, %v681
        %v938 = vpack.c.b16 %v698, %v682
        %v939 = vpack.c.b16 %v699, %v683
        %v940 = vpack.c.b16 %v700, %v684
        %v941 = vpack.c.b16 %v701, %v685
        %v942 = vpack.c.b16 %v702, %v686
        %v943 = vpack.c.b16 %v703, %v687
        %v944 = vpack.c.b16 %v704, %v688
        %v945 = vpack.c.b16 %v721, %v705
        %v946 = vpack.c.b16 %v722, %v706
        %v947 = vpack.c.b16 %v723, %v707
        %v948 = vpack.c.b16 %v724, %v708
        %v949 = vpack.c.b16 %v725, %v709
        %v950 = vpack.c.b16 %v726, %v710
        %v951 = vpack.c.b16 %v727, %v711
        %v952 = vpack.c.b16 %v728, %v712
        %v953 = vpack.c.b16 %v729, %v713
        %v954 = vpack.c.b16 %v730, %v714
        %v955 = vpack.c.b16 %v731, %v715
        %v956 = vpack.c.b16 %v732, %v716
        %v957 = vpack.c.b16 %v733, %v717
        %v958 = vpack.c.b16 %v734, %v718
        %v959 = vpack.c.b16 %v735, %v719
        %v960 = vpack.c.b16 %v736, %v720
        %v961 = vpack.c.b16 %v753, %v737
        %v962 = vpack.c.b16 %v754, %v738
        %v963 = vpack.c.b16 %v755, %v739
        %v964 = vpack.c.b16 %v756, %v740
        %v965 = vpack.c.b16 %v757, %v741
        %v966 = vpack.c.b16 %v758, %v742
        %v967 = vpack.c.b16 %v759, %v743
        %v968 = vpack.c.b16 %v760, %v744
        %v969 = vpack.c.b16 %v761, %v745
        %v970 = vpack.c.b16 %v762, %v746
        %v971 = vpack.c.b16 %v763, %v747
        %v972 = vpack.c.b16 %v764, %v748
        %v973 = vpack.c.b16 %v765, %v749
        %v974 = vpack.c.b16 %v766, %v750
        %v975 = vpack.c.b16 %v767, %v751
        %v976 = vpack.c.b16 %v768, %v752
        %v977 = vpack.c.b16 %v785, %v769
        %v978 = vpack.c.b16 %v786, %v770
        %v979 = vpack.c.b16 %v787, %v771
        %v980 = vpack.c.b16 %v788, %v772
        %v981 = vpack.c.b16 %v789, %v773
        %v982 = vpack.c.b16 %v790, %v774
        %v983 = vpack.c.b16 %v791, %v775
        %v984 = vpack.c.b16 %v792, %v776
        %v985 = vpack.c.b16 %v793, %v777
        %v986 = vpack.c.b16 %v794, %v778
        %v987 = vpack.c.b16 %v795, %v779
        %v988 = vpack.c.b16 %v796, %v780
        %v989 = vpack.c.b16 %v797, %v781
        %v990 = vpack.c.b16 %v798, %v782
        %v991 = vpack.c.b16 %v799, %v783
        %v992 = vpack.c.b16 %v800, %v784
        %v993 = vpack.c.b16 %v817, %v801
        %v994 = vpack.c.b16 %v818, %v802
        %v995 = vpack.c.b16 %v819, %v803
        %v996 = vpack.c.b16 %v820, %v804
        %v997 = vpack.c.b16 %v821, %v805
        %v998 = vpack.c.b16 %v822, %v806
        %v999 = vpack.c.b16 %v823, %v807
        %v1000 = vpack.c.b16 %v824, %v808
        %v1001 = vpack.c.b16 %v825, %v809
        %v1002 = vpack.c.b16 %v826, %v810
        %v1003 = vpack.c.b16 %v827, %v811
        %v1004 = vpack.c.b16 %v828, %v812
        %v1005 = vpack.c.b16 %v829, %v813
        %v1006 = vpack.c.b16 %v830, %v814
        %v1007 = vpack.c.b16 %v831, %v815
        %v1008 = vpack.c.b16 %v832, %v816
        %v1009 = vpack.c.b16 %v849, %v833
        %v1010 = vpack.c.b16 %v850, %v834
        %v1011 = vpack.c.b16 %v851, %v835
        %v1012 = vpack.c.b16 %v852, %v836
        %v1013 = vpack.c.b16 %v853, %v837
        %v1014 = vpack.c.b16 %v854, %v838
        %v1015 = vpack.c.b16 %v855, %v839
        %v1016 = vpack.c.b16 %v856, %v840
        %v1017 = vpack.c.b16 %v857, %v841
        %v1018 = vpack.c.b16 %v858, %v842
        %v1019 = vpack.c.b16 %v859, %v843
        %v1020 = vpack.c.b16 %v860, %v844
        %v1021 = vpack.c.b16 %v861, %v845
        %v1022 = vpack.c.b16 %v862, %v846
        %v1023 = vpack.c.b16 %v863, %v847
        %v1024 = vpack.c.b16 %v864, %v848
        %v1025 = vpack.c.b16 %v881, %v865
        %v1026 = vpack.c.b16 %v882, %v866
        %v1027 = vpack.c.b16 %v883, %v867
        %v1028 = vpack.c.b16 %v884, %v868
        %v1029 = vpack.c.b16 %v885, %v869
        %v1030 = vpack.c.b16 %v886, %v870
        %v1031 = vpack.c.b16 %v887, %v871
        %v1032 = vpack.c.b16 %v888, %v872
        %v1033 = vpack.c.b16 %v889, %v873
        %v1034 = vpack.c.b16 %v890, %v874
        %v1035 = vpack.c.b16 %v891, %v875
        %v1036 = vpack.c.b16 %v892, %v876
        %v1037 = vpack.c.b16 %v893, %v877
        %v1038 = vpack.c.b16 %v894, %v878
        %v1039 = vpack.c.b16 %v895, %v879
        %v1040 = vpack.c.b16 %v896, %v880
        %v1041 = vpack.c.b16 %v913, %v897
        %v1042 = vpack.c.b16 %v914, %v898
        %v1043 = vpack.c.b16 %v915, %v899
        %v1044 = vpack.c.b16 %v916, %v900
        %v1045 = vpack.c.b16 %v917, %v901
        %v1046 = vpack.c.b16 %v918, %v902
        %v1047 = vpack.c.b16 %v919, %v903
        %v1048 = vpack.c.b16 %v920, %v904
        %v1049 = vpack.c.b16 %v921, %v905
        %v1050 = vpack.c.b16 %v922, %v906
        %v1051 = vpack.c.b16 %v923, %v907
        %v1052 = vpack.c.b16 %v924, %v908
        %v1053 = vpack.c.b16 %v925, %v909
        %v1054 = vpack.c.b16 %v926, %v910
        %v1055 = vpack.c.b16 %v927, %v911
        %v1056 = vpack.c.b16 %v928, %v912
        %1185 = vmatprep.subr.bf16.mxu0 %v1042
        %1186 = vmatpush1.bf16.msra.mxu0 %v1041
        %1187 = vmatprep.subr.bf16.mxu0 %v1026
        %1188 = vmatpush1.bf16.msra.mxu0 %v1025
        %1189 = vmatprep.subr.bf16.mxu0 %v1010
        %1190 = vmatpush1.bf16.msra.mxu0 %v1009
        %1191 = vmatprep.subr.bf16.mxu0 %v994
        %1192 = vmatpush1.bf16.msra.mxu0 %v993
        %1193 = vmatprep.subr.bf16.mxu0 %v978
        %1194 = vmatpush1.bf16.msra.mxu0 %v977
        %1195 = vmatprep.subr.bf16.mxu0 %v962
        %1196 = vmatpush1.bf16.msra.mxu0 %v961
        %1197 = vmatprep.subr.bf16.mxu0 %v946
        %1198 = vmatpush1.bf16.msra.mxu0 %v945
        %1199 = vmatprep.subr.bf16.mxu0 %v930
        %1200 = vmatpush1.bf16.msra.mxu0 %v929
        %1201 = vmatprep.subr.bf16.mxu0 0
        %1202 = vmatpush2.bf16.msra.mxu0 0
        %1203 = vmatprep.subr.bf16.mxu0 0
        %1204 = vmatpush2.bf16.msra.mxu0 0
        %1205 = vmatprep.subr.bf16.mxu0 0
        %1206 = vmatpush2.bf16.msra.mxu0 0
        %1207 = vmatprep.subr.bf16.mxu0 0
        %1208 = vmatpush2.bf16.msra.mxu0 0
        %1209 = vmatprep.subr.bf16.mxu0 0
        %1210 = vmatpush2.bf16.msra.mxu0 0
        %1211 = vmatprep.subr.bf16.mxu0 0
        %1212 = vmatpush2.bf16.msra.mxu0 0
        %1213 = vmatprep.subr.bf16.mxu0 0
        %1214 = vmatpush2.bf16.msra.mxu0 0
        %1215 = vmatprep.subr.bf16.mxu0 0
        %1216 = vmatpush2.bf16.msra.mxu0 0
        %1217 = vmatprep.mubr.bf16.mxu0 0
        %1218 = vmatmul.mubr.bf16.gmra.mxu0 %v543
        %v1219 = vpop.f32.mrf.mxu0
        %v1220 = vadd.f32 %v462, %v1219
        %v1221 = vpop.f32.mrf.mxu0
        %v1222 = vadd.f32 %v466, %v1221
        %v1223 = vpop.f32.mrf.mxu0
        %v1224 = vadd.f32 %v462, %v1223
        %v1225 = vpop.f32.mrf.mxu0
        %v1226 = vadd.f32 %v466, %v1225
        %1227 = vdwg.mxu0
        %1228 = vmatprep.subr.bf16.mxu0 %v1044
        %1229 = vmatpush1.bf16.msra.mxu0 %v1043
        %1230 = vmatprep.subr.bf16.mxu0 %v1028
        %1231 = vmatpush1.bf16.msra.mxu0 %v1027
        %1232 = vmatprep.subr.bf16.mxu0 %v1012
        %1233 = vmatpush1.bf16.msra.mxu0 %v1011
        %1234 = vmatprep.subr.bf16.mxu0 %v996
        %1235 = vmatpush1.bf16.msra.mxu0 %v995
        %1236 = vmatprep.subr.bf16.mxu0 %v980
        %1237 = vmatpush1.bf16.msra.mxu0 %v979
        %1238 = vmatprep.subr.bf16.mxu0 %v964
        %1239 = vmatpush1.bf16.msra.mxu0 %v963
        %1240 = vmatprep.subr.bf16.mxu0 %v948
        %1241 = vmatpush1.bf16.msra.mxu0 %v947
        %1242 = vmatprep.subr.bf16.mxu0 %v932
        %1243 = vmatpush1.bf16.msra.mxu0 %v931
        %1244 = vmatprep.subr.bf16.mxu0 0
        %1245 = vmatpush2.bf16.msra.mxu0 0
        %1246 = vmatprep.subr.bf16.mxu0 0
        %1247 = vmatpush2.bf16.msra.mxu0 0
        %1248 = vmatprep.subr.bf16.mxu0 0
        %1249 = vmatpush2.bf16.msra.mxu0 0
        %1250 = vmatprep.subr.bf16.mxu0 0
        %1251 = vmatpush2.bf16.msra.mxu0 0
        %1252 = vmatprep.subr.bf16.mxu0 0
        %1253 = vmatpush2.bf16.msra.mxu0 0
        %1254 = vmatprep.subr.bf16.mxu0 0
        %1255 = vmatpush2.bf16.msra.mxu0 0
        %1256 = vmatprep.subr.bf16.mxu0 0
        %1257 = vmatpush2.bf16.msra.mxu0 0
        %1258 = vmatprep.subr.bf16.mxu0 0
        %1259 = vmatpush2.bf16.msra.mxu0 0
        %1260 = vmatprep.mubr.bf16.mxu0 0
        %1261 = vmatmul.mubr.bf16.gmra.mxu0 %v543
        %v1262 = vpop.f32.mrf.mxu0
        %v1263 = vadd.f32 %v470, %v1262
        %v1264 = vpop.f32.mrf.mxu0
        %v1265 = vadd.f32 %v474, %v1264
        %v1266 = vpop.f32.mrf.mxu0
        %v1267 = vadd.f32 %v470, %v1266
        %v1268 = vpop.f32.mrf.mxu0
        %v1269 = vadd.f32 %v474, %v1268
        %1270 = vdwg.mxu0
        %1271 = vmatprep.subr.bf16.mxu0 %v1046
        %1272 = vmatpush1.bf16.msra.mxu0 %v1045
        %1273 = vmatprep.subr.bf16.mxu0 %v1030
        %1274 = vmatpush1.bf16.msra.mxu0 %v1029
        %1275 = vmatprep.subr.bf16.mxu0 %v1014
        %1276 = vmatpush1.bf16.msra.mxu0 %v1013
        %1277 = vmatprep.subr.bf16.mxu0 %v998
        %1278 = vmatpush1.bf16.msra.mxu0 %v997
        %1279 = vmatprep.subr.bf16.mxu0 %v982
        %1280 = vmatpush1.bf16.msra.mxu0 %v981
        %1281 = vmatprep.subr.bf16.mxu0 %v966
        %1282 = vmatpush1.bf16.msra.mxu0 %v965
        %1283 = vmatprep.subr.bf16.mxu0 %v950
        %1284 = vmatpush1.bf16.msra.mxu0 %v949
        %1285 = vmatprep.subr.bf16.mxu0 %v934
        %1286 = vmatpush1.bf16.msra.mxu0 %v933
        %1287 = vmatprep.subr.bf16.mxu0 0
        %1288 = vmatpush2.bf16.msra.mxu0 0
        %1289 = vmatprep.subr.bf16.mxu0 0
        %1290 = vmatpush2.bf16.msra.mxu0 0
        %1291 = vmatprep.subr.bf16.mxu0 0
        %1292 = vmatpush2.bf16.msra.mxu0 0
        %1293 = vmatprep.subr.bf16.mxu0 0
        %1294 = vmatpush2.bf16.msra.mxu0 0
        %1295 = vmatprep.subr.bf16.mxu0 0
        %1296 = vmatpush2.bf16.msra.mxu0 0
        %1297 = vmatprep.subr.bf16.mxu0 0
        %1298 = vmatpush2.bf16.msra.mxu0 0
        %1299 = vmatprep.subr.bf16.mxu0 0
        %1300 = vmatpush2.bf16.msra.mxu0 0
        %1301 = vmatprep.subr.bf16.mxu0 0
        %1302 = vmatpush2.bf16.msra.mxu0 0
        %1303 = vmatprep.mubr.bf16.mxu0 0
        %1304 = vmatmul.mubr.bf16.gmra.mxu0 %v543
        %v1305 = vpop.f32.mrf.mxu0
        %v1306 = vadd.f32 %v478, %v1305
        %v1307 = vpop.f32.mrf.mxu0
        %v1308 = vadd.f32 %v482, %v1307
        %v1309 = vpop.f32.mrf.mxu0
        %v1310 = vadd.f32 %v478, %v1309
        %v1311 = vpop.f32.mrf.mxu0
        %v1312 = vadd.f32 %v482, %v1311
        %1313 = vdwg.mxu0
        %1314 = vmatprep.subr.bf16.mxu0 %v1048
        %1315 = vmatpush1.bf16.msra.mxu0 %v1047
        %1316 = vmatprep.subr.bf16.mxu0 %v1032
        %1317 = vmatpush1.bf16.msra.mxu0 %v1031
        %1318 = vmatprep.subr.bf16.mxu0 %v1016
        %1319 = vmatpush1.bf16.msra.mxu0 %v1015
        %1320 = vmatprep.subr.bf16.mxu0 %v1000
        %1321 = vmatpush1.bf16.msra.mxu0 %v999
        %1322 = vmatprep.subr.bf16.mxu0 %v984
        %1323 = vmatpush1.bf16.msra.mxu0 %v983
        %1324 = vmatprep.subr.bf16.mxu0 %v968
        %1325 = vmatpush1.bf16.msra.mxu0 %v967
        %1326 = vmatprep.subr.bf16.mxu0 %v952
        %1327 = vmatpush1.bf16.msra.mxu0 %v951
        %1328 = vmatprep.subr.bf16.mxu0 %v936
        %1329 = vmatpush1.bf16.msra.mxu0 %v935
        %1330 = vmatprep.subr.bf16.mxu0 0
        %1331 = vmatpush2.bf16.msra.mxu0 0
        %1332 = vmatprep.subr.bf16.mxu0 0
        %1333 = vmatpush2.bf16.msra.mxu0 0
        %1334 = vmatprep.subr.bf16.mxu0 0
        %1335 = vmatpush2.bf16.msra.mxu0 0
        %1336 = vmatprep.subr.bf16.mxu0 0
        %1337 = vmatpush2.bf16.msra.mxu0 0
        %1338 = vmatprep.subr.bf16.mxu0 0
        %1339 = vmatpush2.bf16.msra.mxu0 0
        %1340 = vmatprep.subr.bf16.mxu0 0
        %1341 = vmatpush2.bf16.msra.mxu0 0
        %1342 = vmatprep.subr.bf16.mxu0 0
        %1343 = vmatpush2.bf16.msra.mxu0 0
        %1344 = vmatprep.subr.bf16.mxu0 0
        %1345 = vmatpush2.bf16.msra.mxu0 0
        %1346 = vmatprep.mubr.bf16.mxu0 0
        %1347 = vmatmul.mubr.bf16.gmra.mxu0 %v543
        %v1348 = vpop.f32.mrf.mxu0
        %v1349 = vadd.f32 %v486, %v1348
        %v1350 = vpop.f32.mrf.mxu0
        %v1351 = vadd.f32 %v490, %v1350
        %v1352 = vpop.f32.mrf.mxu0
        %v1353 = vadd.f32 %v486, %v1352
        %v1354 = vpop.f32.mrf.mxu0
        %v1355 = vadd.f32 %v490, %v1354
        %1356 = vdwg.mxu0
        %1357 = vmatprep.subr.bf16.mxu0 %v1050
        %1358 = vmatpush1.bf16.msra.mxu0 %v1049
        %1359 = vmatprep.subr.bf16.mxu0 %v1034
        %1360 = vmatpush1.bf16.msra.mxu0 %v1033
        %1361 = vmatprep.subr.bf16.mxu0 %v1018
        %1362 = vmatpush1.bf16.msra.mxu0 %v1017
        %1363 = vmatprep.subr.bf16.mxu0 %v1002
        %1364 = vmatpush1.bf16.msra.mxu0 %v1001
        %1365 = vmatprep.subr.bf16.mxu0 %v986
        %1366 = vmatpush1.bf16.msra.mxu0 %v985
        %1367 = vmatprep.subr.bf16.mxu0 %v970
        %1368 = vmatpush1.bf16.msra.mxu0 %v969
        %1369 = vmatprep.subr.bf16.mxu0 %v954
        %1370 = vmatpush1.bf16.msra.mxu0 %v953
        %1371 = vmatprep.subr.bf16.mxu0 %v938
        %1372 = vmatpush1.bf16.msra.mxu0 %v937
        %1373 = vmatprep.subr.bf16.mxu0 0
        %1374 = vmatpush2.bf16.msra.mxu0 0
        %1375 = vmatprep.subr.bf16.mxu0 0
        %1376 = vmatpush2.bf16.msra.mxu0 0
        %1377 = vmatprep.subr.bf16.mxu0 0
        %1378 = vmatpush2.bf16.msra.mxu0 0
        %1379 = vmatprep.subr.bf16.mxu0 0
        %1380 = vmatpush2.bf16.msra.mxu0 0
        %1381 = vmatprep.subr.bf16.mxu0 0
        %1382 = vmatpush2.bf16.msra.mxu0 0
        %1383 = vmatprep.subr.bf16.mxu0 0
        %1384 = vmatpush2.bf16.msra.mxu0 0
        %1385 = vmatprep.subr.bf16.mxu0 0
        %1386 = vmatpush2.bf16.msra.mxu0 0
        %1387 = vmatprep.subr.bf16.mxu0 0
        %1388 = vmatpush2.bf16.msra.mxu0 0
        %1389 = vmatprep.mubr.bf16.mxu0 0
        %1390 = vmatmul.mubr.bf16.gmra.mxu0 %v543
        %v1391 = vpop.f32.mrf.mxu0
        %v1392 = vadd.f32 %v494, %v1391
        %v1393 = vpop.f32.mrf.mxu0
        %v1394 = vadd.f32 %v498, %v1393
        %v1395 = vpop.f32.mrf.mxu0
        %v1396 = vadd.f32 %v494, %v1395
        %v1397 = vpop.f32.mrf.mxu0
        %v1398 = vadd.f32 %v498, %v1397
        %1399 = vdwg.mxu0
        %1400 = vmatprep.subr.bf16.mxu0 %v1052
        %1401 = vmatpush1.bf16.msra.mxu0 %v1051
        %1402 = vmatprep.subr.bf16.mxu0 %v1036
        %1403 = vmatpush1.bf16.msra.mxu0 %v1035
        %1404 = vmatprep.subr.bf16.mxu0 %v1020
        %1405 = vmatpush1.bf16.msra.mxu0 %v1019
        %1406 = vmatprep.subr.bf16.mxu0 %v1004
        %1407 = vmatpush1.bf16.msra.mxu0 %v1003
        %1408 = vmatprep.subr.bf16.mxu0 %v988
        %1409 = vmatpush1.bf16.msra.mxu0 %v987
        %1410 = vmatprep.subr.bf16.mxu0 %v972
        %1411 = vmatpush1.bf16.msra.mxu0 %v971
        %1412 = vmatprep.subr.bf16.mxu0 %v956
        %1413 = vmatpush1.bf16.msra.mxu0 %v955
        %1414 = vmatprep.subr.bf16.mxu0 %v940
        %1415 = vmatpush1.bf16.msra.mxu0 %v939
        %1416 = vmatprep.subr.bf16.mxu0 0
        %1417 = vmatpush2.bf16.msra.mxu0 0
        %1418 = vmatprep.subr.bf16.mxu0 0
        %1419 = vmatpush2.bf16.msra.mxu0 0
        %1420 = vmatprep.subr.bf16.mxu0 0
        %1421 = vmatpush2.bf16.msra.mxu0 0
        %1422 = vmatprep.subr.bf16.mxu0 0
        %1423 = vmatpush2.bf16.msra.mxu0 0
        %1424 = vmatprep.subr.bf16.mxu0 0
        %1425 = vmatpush2.bf16.msra.mxu0 0
        %1426 = vmatprep.subr.bf16.mxu0 0
        %1427 = vmatpush2.bf16.msra.mxu0 0
        %1428 = vmatprep.subr.bf16.mxu0 0
        %1429 = vmatpush2.bf16.msra.mxu0 0
        %1430 = vmatprep.subr.bf16.mxu0 0
        %1431 = vmatpush2.bf16.msra.mxu0 0
        %1432 = vmatprep.mubr.bf16.mxu0 0
        %1433 = vmatmul.mubr.bf16.gmra.mxu0 %v543
        %v1434 = vpop.f32.mrf.mxu0
        %v1435 = vadd.f32 %v502, %v1434
        %v1436 = vpop.f32.mrf.mxu0
        %v1437 = vadd.f32 %v506, %v1436
        %v1438 = vpop.f32.mrf.mxu0
        %v1439 = vadd.f32 %v502, %v1438
        %v1440 = vpop.f32.mrf.mxu0
        %v1441 = vadd.f32 %v506, %v1440
        %1442 = vdwg.mxu0
        %1443 = vmatprep.subr.bf16.mxu0 %v1054
        %1444 = vmatpush1.bf16.msra.mxu0 %v1053
        %1445 = vmatprep.subr.bf16.mxu0 %v1038
        %1446 = vmatpush1.bf16.msra.mxu0 %v1037
        %1447 = vmatprep.subr.bf16.mxu0 %v1022
        %1448 = vmatpush1.bf16.msra.mxu0 %v1021
        %1449 = vmatprep.subr.bf16.mxu0 %v1006
        %1450 = vmatpush1.bf16.msra.mxu0 %v1005
        %1451 = vmatprep.subr.bf16.mxu0 %v990
        %1452 = vmatpush1.bf16.msra.mxu0 %v989
        %1453 = vmatprep.subr.bf16.mxu0 %v974
        %1454 = vmatpush1.bf16.msra.mxu0 %v973
        %1455 = vmatprep.subr.bf16.mxu0 %v958
        %1456 = vmatpush1.bf16.msra.mxu0 %v957
        %1457 = vmatprep.subr.bf16.mxu0 %v942
        %1458 = vmatpush1.bf16.msra.mxu0 %v941
        %1459 = vmatprep.subr.bf16.mxu0 0
        %1460 = vmatpush2.bf16.msra.mxu0 0
        %1461 = vmatprep.subr.bf16.mxu0 0
        %1462 = vmatpush2.bf16.msra.mxu0 0
        %1463 = vmatprep.subr.bf16.mxu0 0
        %1464 = vmatpush2.bf16.msra.mxu0 0
        %1465 = vmatprep.subr.bf16.mxu0 0
        %1466 = vmatpush2.bf16.msra.mxu0 0
        %1467 = vmatprep.subr.bf16.mxu0 0
        %1468 = vmatpush2.bf16.msra.mxu0 0
        %1469 = vmatprep.subr.bf16.mxu0 0
        %1470 = vmatpush2.bf16.msra.mxu0 0
        %1471 = vmatprep.subr.bf16.mxu0 0
        %1472 = vmatpush2.bf16.msra.mxu0 0
        %1473 = vmatprep.subr.bf16.mxu0 0
        %1474 = vmatpush2.bf16.msra.mxu0 0
        %1475 = vmatprep.mubr.bf16.mxu0 0
        %1476 = vmatmul.mubr.bf16.gmra.mxu0 %v543
        %v1477 = vpop.f32.mrf.mxu0
        %v1478 = vadd.f32 %v510, %v1477
        %v1479 = vpop.f32.mrf.mxu0
        %v1480 = vadd.f32 %v514, %v1479
        %v1481 = vpop.f32.mrf.mxu0
        %v1482 = vadd.f32 %v510, %v1481
        %v1483 = vpop.f32.mrf.mxu0
        %v1484 = vadd.f32 %v514, %v1483
        %1485 = vdwg.mxu0
        %1486 = vmatprep.subr.bf16.mxu0 %v1056
        %1487 = vmatpush1.bf16.msra.mxu0 %v1055
        %1488 = vmatprep.subr.bf16.mxu0 %v1040
        %1489 = vmatpush1.bf16.msra.mxu0 %v1039
        %1490 = vmatprep.subr.bf16.mxu0 %v1024
        %1491 = vmatpush1.bf16.msra.mxu0 %v1023
        %1492 = vmatprep.subr.bf16.mxu0 %v1008
        %1493 = vmatpush1.bf16.msra.mxu0 %v1007
        %1494 = vmatprep.subr.bf16.mxu0 %v992
        %1495 = vmatpush1.bf16.msra.mxu0 %v991
        %1496 = vmatprep.subr.bf16.mxu0 %v976
        %1497 = vmatpush1.bf16.msra.mxu0 %v975
        %1498 = vmatprep.subr.bf16.mxu0 %v960
        %1499 = vmatpush1.bf16.msra.mxu0 %v959
        %1500 = vmatprep.subr.bf16.mxu0 %v944
        %1501 = vmatpush1.bf16.msra.mxu0 %v943
        %1502 = vmatprep.subr.bf16.mxu0 0
        %1503 = vmatpush2.bf16.msra.mxu0 0
        %1504 = vmatprep.subr.bf16.mxu0 0
        %1505 = vmatpush2.bf16.msra.mxu0 0
        %1506 = vmatprep.subr.bf16.mxu0 0
        %1507 = vmatpush2.bf16.msra.mxu0 0
        %1508 = vmatprep.subr.bf16.mxu0 0
        %1509 = vmatpush2.bf16.msra.mxu0 0
        %1510 = vmatprep.subr.bf16.mxu0 0
        %1511 = vmatpush2.bf16.msra.mxu0 0
        %1512 = vmatprep.subr.bf16.mxu0 0
        %1513 = vmatpush2.bf16.msra.mxu0 0
        %1514 = vmatprep.subr.bf16.mxu0 0
        %1515 = vmatpush2.bf16.msra.mxu0 0
        %1516 = vmatprep.subr.bf16.mxu0 0
        %1517 = vmatpush2.bf16.msra.mxu0 0
        %1518 = vmatprep.mubr.bf16.mxu0 0
        %1519 = vmatmul.mubr.bf16.gmra.mxu0 %v543
        %v1520 = vpop.f32.mrf.mxu0
        %v1521 = vadd.f32 %v518, %v1520
        %v1522 = vpop.f32.mrf.mxu0
        %v1523 = vadd.f32 %v522, %v1522
        %v1524 = vpop.f32.mrf.mxu0
        %v1525 = vadd.f32 %v518, %v1524
        %v1526 = vpop.f32.mrf.mxu0
        %v1527 = vadd.f32 %v522, %v1526
        %1528 = vdwg.mxu0
        %v1529 = vmax.f32 %v1220, 0.0
        %v1530 = vmax.f32 %v1222, 0.0
        %v1531 = vmax.f32 %v1263, 0.0
        %v1532 = vmax.f32 %v1265, 0.0
        %v1533 = vmax.f32 %v1306, 0.0
        %v1534 = vmax.f32 %v1308, 0.0
        %v1535 = vmax.f32 %v1349, 0.0
        %v1536 = vmax.f32 %v1351, 0.0
        %v1537 = vmax.f32 %v1392, 0.0
        %v1538 = vmax.f32 %v1394, 0.0
        %v1539 = vmax.f32 %v1435, 0.0
        %v1540 = vmax.f32 %v1437, 0.0
        %v1541 = vmax.f32 %v1478, 0.0
        %v1542 = vmax.f32 %v1480, 0.0
        %v1543 = vmax.f32 %v1521, 0.0
        %v1544 = vmax.f32 %v1523, 0.0
        %v1545 = vmax.f32 %v1224, 0.0
        %v1546 = vmax.f32 %v1226, 0.0
        %v1547 = vmax.f32 %v1267, 0.0
        %v1548 = vmax.f32 %v1269, 0.0
        %v1549 = vmax.f32 %v1310, 0.0
        %v1550 = vmax.f32 %v1312, 0.0
        %v1551 = vmax.f32 %v1353, 0.0
        %v1552 = vmax.f32 %v1355, 0.0
        %v1553 = vmax.f32 %v1396, 0.0
        %v1554 = vmax.f32 %v1398, 0.0
        %v1555 = vmax.f32 %v1439, 0.0
        %v1556 = vmax.f32 %v1441, 0.0
        %v1557 = vmax.f32 %v1482, 0.0
        %v1558 = vmax.f32 %v1484, 0.0
        %v1559 = vmax.f32 %v1525, 0.0
        %v1560 = vmax.f32 %v1527, 0.0
        %vm1593 = vcmask 1041408
        %v1594 = vrot.slane %v1529, 6
        %v1595 = vrot.slane %v1530, 6
        %v1596 = vrot.slane %v1531, 6
        %v1597 = vrot.slane %v1532, 6
        %v1598 = vrot.slane %v1533, 6
        %v1599 = vrot.slane %v1534, 6
        %v1600 = vrot.slane %v1535, 6
        %v1601 = vrot.slane %v1536, 6
        %v1602 = vrot.slane %v1537, 6
        %v1603 = vrot.slane %v1538, 6
        %v1604 = vrot.slane %v1539, 6
        %v1605 = vrot.slane %v1540, 6
        %v1606 = vrot.slane %v1541, 6
        %v1607 = vrot.slane %v1542, 6
        %v1608 = vrot.slane %v1543, 6
        %v1609 = vrot.slane %v1544, 6
        %v1610 = vrot.slane %v1545, 6
        %v1611 = vsel %vm1593, %v1594, %v1610
        %v1612 = vrot.slane %v1546, 6
        %v1613 = vsel %vm1593, %v1595, %v1612
        %v1614 = vrot.slane %v1547, 6
        %v1615 = vsel %vm1593, %v1596, %v1614
        %v1616 = vrot.slane %v1548, 6
        %v1617 = vsel %vm1593, %v1597, %v1616
        %v1618 = vrot.slane %v1549, 6
        %v1619 = vsel %vm1593, %v1598, %v1618
        %v1620 = vrot.slane %v1550, 6
        %v1621 = vsel %vm1593, %v1599, %v1620
        %v1622 = vrot.slane %v1551, 6
        %v1623 = vsel %vm1593, %v1600, %v1622
        %v1624 = vrot.slane %v1552, 6
        %v1625 = vsel %vm1593, %v1601, %v1624
        %v1626 = vrot.slane %v1553, 6
        %v1627 = vsel %vm1593, %v1602, %v1626
        %v1628 = vrot.slane %v1554, 6
        %v1629 = vsel %vm1593, %v1603, %v1628
        %v1630 = vrot.slane %v1555, 6
        %v1631 = vsel %vm1593, %v1604, %v1630
        %v1632 = vrot.slane %v1556, 6
        %v1633 = vsel %vm1593, %v1605, %v1632
        %v1634 = vrot.slane %v1557, 6
        %v1635 = vsel %vm1593, %v1606, %v1634
        %v1636 = vrot.slane %v1558, 6
        %v1637 = vsel %vm1593, %v1607, %v1636
        %v1638 = vrot.slane %v1559, 6
        %v1639 = vsel %vm1593, %v1608, %v1638
        %v1640 = vrot.slane %v1560, 6
        %v1641 = vsel %vm1593, %v1609, %v1640
        %v1674 = vsel %vm1593, -inf, %v1594
        %v1675 = vsel %vm1593, -inf, %v1595
        %v1676 = vsel %vm1593, -inf, %v1596
        %v1677 = vsel %vm1593, -inf, %v1597
        %v1678 = vsel %vm1593, -inf, %v1598
        %v1679 = vsel %vm1593, -inf, %v1599
        %v1680 = vsel %vm1593, -inf, %v1600
        %v1681 = vsel %vm1593, -inf, %v1601
        %v1682 = vsel %vm1593, -inf, %v1602
        %v1683 = vsel %vm1593, -inf, %v1603
        %v1684 = vsel %vm1593, -inf, %v1604
        %v1685 = vsel %vm1593, -inf, %v1605
        %v1686 = vsel %vm1593, -inf, %v1606
        %v1687 = vsel %vm1593, -inf, %v1607
        %v1688 = vsel %vm1593, -inf, %v1608
        %v1689 = vsel %vm1593, -inf, %v1609
        %v1690 = vmax.f32 %v1529, %v1674
        %v1691 = vmax.f32 %v1530, %v1675
        %v1692 = vmax.f32 %v1531, %v1676
        %v1693 = vmax.f32 %v1532, %v1677
        %v1694 = vmax.f32 %v1533, %v1678
        %v1695 = vmax.f32 %v1534, %v1679
        %v1696 = vmax.f32 %v1535, %v1680
        %v1697 = vmax.f32 %v1536, %v1681
        %v1698 = vmax.f32 %v1537, %v1682
        %v1699 = vmax.f32 %v1538, %v1683
        %v1700 = vmax.f32 %v1539, %v1684
        %v1701 = vmax.f32 %v1540, %v1685
        %v1702 = vmax.f32 %v1541, %v1686
        %v1703 = vmax.f32 %v1542, %v1687
        %v1704 = vmax.f32 %v1543, %v1688
        %v1705 = vmax.f32 %v1544, %v1689
        %v1706 = vmax.f32 %v1545, %v1611
        %v1707 = vmax.f32 %v1546, %v1613
        %v1708 = vmax.f32 %v1547, %v1615
        %v1709 = vmax.f32 %v1548, %v1617
        %v1710 = vmax.f32 %v1549, %v1619
        %v1711 = vmax.f32 %v1550, %v1621
        %v1712 = vmax.f32 %v1551, %v1623
        %v1713 = vmax.f32 %v1552, %v1625
        %v1714 = vmax.f32 %v1553, %v1627
        %v1715 = vmax.f32 %v1554, %v1629
        %v1716 = vmax.f32 %v1555, %v1631
        %v1717 = vmax.f32 %v1556, %v1633
        %v1718 = vmax.f32 %v1557, %v1635
        %v1719 = vmax.f32 %v1558, %v1637
        %v1720 = vmax.f32 %v1559, %v1639
        %v1721 = vmax.f32 %v1560, %v1641
        %vm1754 = vcmask 1043456
        %v1755 = vrot.slane %v1690, 4
        %v1756 = vrot.slane %v1691, 4
        %v1757 = vrot.slane %v1692, 4
        %v1758 = vrot.slane %v1693, 4
        %v1759 = vrot.slane %v1694, 4
        %v1760 = vrot.slane %v1695, 4
        %v1761 = vrot.slane %v1696, 4
        %v1762 = vrot.slane %v1697, 4
        %v1763 = vrot.slane %v1698, 4
        %v1764 = vrot.slane %v1699, 4
        %v1765 = vrot.slane %v1700, 4
        %v1766 = vrot.slane %v1701, 4
        %v1767 = vrot.slane %v1702, 4
        %v1768 = vrot.slane %v1703, 4
        %v1769 = vrot.slane %v1704, 4
        %v1770 = vrot.slane %v1705, 4
        %v1771 = vrot.slane %v1706, 4
        %v1772 = vsel %vm1754, %v1755, %v1771
        %v1773 = vrot.slane %v1707, 4
        %v1774 = vsel %vm1754, %v1756, %v1773
        %v1775 = vrot.slane %v1708, 4
        %v1776 = vsel %vm1754, %v1757, %v1775
        %v1777 = vrot.slane %v1709, 4
        %v1778 = vsel %vm1754, %v1758, %v1777
        %v1779 = vrot.slane %v1710, 4
        %v1780 = vsel %vm1754, %v1759, %v1779
        %v1781 = vrot.slane %v1711, 4
        %v1782 = vsel %vm1754, %v1760, %v1781
        %v1783 = vrot.slane %v1712, 4
        %v1784 = vsel %vm1754, %v1761, %v1783
        %v1785 = vrot.slane %v1713, 4
        %v1786 = vsel %vm1754, %v1762, %v1785
        %v1787 = vrot.slane %v1714, 4
        %v1788 = vsel %vm1754, %v1763, %v1787
        %v1789 = vrot.slane %v1715, 4
        %v1790 = vsel %vm1754, %v1764, %v1789
        %v1791 = vrot.slane %v1716, 4
        %v1792 = vsel %vm1754, %v1765, %v1791
        %v1793 = vrot.slane %v1717, 4
        %v1794 = vsel %vm1754, %v1766, %v1793
        %v1795 = vrot.slane %v1718, 4
        %v1796 = vsel %vm1754, %v1767, %v1795
        %v1797 = vrot.slane %v1719, 4
        %v1798 = vsel %vm1754, %v1768, %v1797
        %v1799 = vrot.slane %v1720, 4
        %v1800 = vsel %vm1754, %v1769, %v1799
        %v1801 = vrot.slane %v1721, 4
        %v1802 = vsel %vm1754, %v1770, %v1801
        %v1835 = vsel %vm1754, -inf, %v1755
        %v1836 = vsel %vm1754, -inf, %v1756
        %v1837 = vsel %vm1754, -inf, %v1757
        %v1838 = vsel %vm1754, -inf, %v1758
        %v1839 = vsel %vm1754, -inf, %v1759
        %v1840 = vsel %vm1754, -inf, %v1760
        %v1841 = vsel %vm1754, -inf, %v1761
        %v1842 = vsel %vm1754, -inf, %v1762
        %v1843 = vsel %vm1754, -inf, %v1763
        %v1844 = vsel %vm1754, -inf, %v1764
        %v1845 = vsel %vm1754, -inf, %v1765
        %v1846 = vsel %vm1754, -inf, %v1766
        %v1847 = vsel %vm1754, -inf, %v1767
        %v1848 = vsel %vm1754, -inf, %v1768
        %v1849 = vsel %vm1754, -inf, %v1769
        %v1850 = vsel %vm1754, -inf, %v1770
        %v1851 = vmax.f32 %v1690, %v1835
        %v1852 = vmax.f32 %v1691, %v1836
        %v1853 = vmax.f32 %v1692, %v1837
        %v1854 = vmax.f32 %v1693, %v1838
        %v1855 = vmax.f32 %v1694, %v1839
        %v1856 = vmax.f32 %v1695, %v1840
        %v1857 = vmax.f32 %v1696, %v1841
        %v1858 = vmax.f32 %v1697, %v1842
        %v1859 = vmax.f32 %v1698, %v1843
        %v1860 = vmax.f32 %v1699, %v1844
        %v1861 = vmax.f32 %v1700, %v1845
        %v1862 = vmax.f32 %v1701, %v1846
        %v1863 = vmax.f32 %v1702, %v1847
        %v1864 = vmax.f32 %v1703, %v1848
        %v1865 = vmax.f32 %v1704, %v1849
        %v1866 = vmax.f32 %v1705, %v1850
        %v1867 = vmax.f32 %v1706, %v1772
        %v1868 = vmax.f32 %v1707, %v1774
        %v1869 = vmax.f32 %v1708, %v1776
        %v1870 = vmax.f32 %v1709, %v1778
        %v1871 = vmax.f32 %v1710, %v1780
        %v1872 = vmax.f32 %v1711, %v1782
        %v1873 = vmax.f32 %v1712, %v1784
        %v1874 = vmax.f32 %v1713, %v1786
        %v1875 = vmax.f32 %v1714, %v1788
        %v1876 = vmax.f32 %v1715, %v1790
        %v1877 = vmax.f32 %v1716, %v1792
        %v1878 = vmax.f32 %v1717, %v1794
        %v1879 = vmax.f32 %v1718, %v1796
        %v1880 = vmax.f32 %v1719, %v1798
        %v1881 = vmax.f32 %v1720, %v1800
        %v1882 = vmax.f32 %v1721, %v1802
        %v1883 = vmax.f32 %v1867, %v1851
        %v1884 = vmax.f32 %v1868, %v1852
        %v1885 = vmax.f32 %v1869, %v1853
        %v1886 = vmax.f32 %v1870, %v1854
        %v1887 = vmax.f32 %v1871, %v1855
        %v1888 = vmax.f32 %v1872, %v1856
        %v1889 = vmax.f32 %v1873, %v1857
        %v1890 = vmax.f32 %v1874, %v1858
        %v1891 = vmax.f32 %v1875, %v1859
        %v1892 = vmax.f32 %v1876, %v1860
        %v1893 = vmax.f32 %v1877, %v1861
        %v1894 = vmax.f32 %v1878, %v1862
        %v1895 = vmax.f32 %v1879, %v1863
        %v1896 = vmax.f32 %v1880, %v1864
        %v1897 = vmax.f32 %v1881, %v1865
        %v1898 = vmax.f32 %v1882, %v1866
        %v1899 = vpack.c.bf16 %v1883, %v1851
        %v1900 = vpack.c.bf16 %v1884, %v1852
        %v1901 = vpack.c.bf16 %v1885, %v1853
        %v1902 = vpack.c.bf16 %v1886, %v1854
        %v1903 = vpack.c.bf16 %v1887, %v1855
        %v1904 = vpack.c.bf16 %v1888, %v1856
        %v1905 = vpack.c.bf16 %v1889, %v1857
        %v1906 = vpack.c.bf16 %v1890, %v1858
        %v1907 = vpack.c.bf16 %v1891, %v1859
        %v1908 = vpack.c.bf16 %v1892, %v1860
        %v1909 = vpack.c.bf16 %v1893, %v1861
        %v1910 = vpack.c.bf16 %v1894, %v1862
        %v1911 = vpack.c.bf16 %v1895, %v1863
        %v1912 = vpack.c.bf16 %v1896, %v1864
        %v1913 = vpack.c.bf16 %v1897, %v1865
        %v1914 = vpack.c.bf16 %v1898, %v1866
        %v1915 = vld [vmem:[%s289] sm:$0xf]
        %v1916 = vld [vmem:[%s289 + $0x4] sm:$0xf]
        %v1917 = vld [vmem:[%s289 + $0x8] sm:$0xf]
        %v1918 = vld [vmem:[%s289 + $0xc] sm:$0xf]
        %v1919 = vld [vmem:[%s289 + $0x10] sm:$0xf]
        %v1920 = vld [vmem:[%s289 + $0x14] sm:$0xf]
        %v1921 = vld [vmem:[%s289 + $0x18] sm:$0xf]
        %v1922 = vld [vmem:[%s289 + $0x1c] sm:$0xf]
        %v1923 = vld [vmem:[%s289 + $0x20] sm:$0xf]
        %v1924 = vld [vmem:[%s289 + $0x24] sm:$0xf]
        %v1925 = vld [vmem:[%s289 + $0x28] sm:$0xf]
        %v1926 = vld [vmem:[%s289 + $0x2c] sm:$0xf]
        %v1927 = vld [vmem:[%s289 + $0x30] sm:$0xf]
        %v1928 = vld [vmem:[%s289 + $0x34] sm:$0xf]
        %v1929 = vld [vmem:[%s289 + $0x38] sm:$0xf]
        %v1930 = vld [vmem:[%s289 + $0x3c] sm:$0xf]
        %v1931 = vld [vmem:[%s289 + $0x40] sm:$0xf]
        %v1932 = vld [vmem:[%s289 + $0x44] sm:$0xf]
        %v1933 = vld [vmem:[%s289 + $0x48] sm:$0xf]
        %v1934 = vld [vmem:[%s289 + $0x4c] sm:$0xf]
        %v1935 = vld [vmem:[%s289 + $0x50] sm:$0xf]
        %v1936 = vld [vmem:[%s289 + $0x54] sm:$0xf]
        %v1937 = vld [vmem:[%s289 + $0x58] sm:$0xf]
        %v1938 = vld [vmem:[%s289 + $0x5c] sm:$0xf]
        %v1939 = vld [vmem:[%s289 + $0x60] sm:$0xf]
        %v1940 = vld [vmem:[%s289 + $0x64] sm:$0xf]
        %v1941 = vld [vmem:[%s289 + $0x68] sm:$0xf]
        %v1942 = vld [vmem:[%s289 + $0x6c] sm:$0xf]
        %v1943 = vld [vmem:[%s289 + $0x70] sm:$0xf]
        %v1944 = vld [vmem:[%s289 + $0x74] sm:$0xf]
        %v1945 = vld [vmem:[%s289 + $0x78] sm:$0xf]
        %v1946 = vld [vmem:[%s289 + $0x7c] sm:$0xf]
        %v1947 = vld [vmem:[%s289 + $0x80] sm:$0xf]
        %v1948 = vld [vmem:[%s289 + $0x84] sm:$0xf]
        %v1949 = vld [vmem:[%s289 + $0x88] sm:$0xf]
        %v1950 = vld [vmem:[%s289 + $0x8c] sm:$0xf]
        %v1951 = vld [vmem:[%s289 + $0x90] sm:$0xf]
        %v1952 = vld [vmem:[%s289 + $0x94] sm:$0xf]
        %v1953 = vld [vmem:[%s289 + $0x98] sm:$0xf]
        %v1954 = vld [vmem:[%s289 + $0x9c] sm:$0xf]
        %v1955 = vld [vmem:[%s289 + $0xa0] sm:$0xf]
        %v1956 = vld [vmem:[%s289 + $0xa4] sm:$0xf]
        %v1957 = vld [vmem:[%s289 + $0xa8] sm:$0xf]
        %v1958 = vld [vmem:[%s289 + $0xac] sm:$0xf]
        %v1959 = vld [vmem:[%s289 + $0xb0] sm:$0xf]
        %v1960 = vld [vmem:[%s289 + $0xb4] sm:$0xf]
        %v1961 = vld [vmem:[%s289 + $0xb8] sm:$0xf]
        %v1962 = vld [vmem:[%s289 + $0xbc] sm:$0xf]
        %v1963 = vld [vmem:[%s289 + $0xc0] sm:$0xf]
        %v1964 = vld [vmem:[%s289 + $0xc4] sm:$0xf]
        %v1965 = vld [vmem:[%s289 + $0xc8] sm:$0xf]
        %v1966 = vld [vmem:[%s289 + $0xcc] sm:$0xf]
        %v1967 = vld [vmem:[%s289 + $0xd0] sm:$0xf]
        %v1968 = vld [vmem:[%s289 + $0xd4] sm:$0xf]
        %v1969 = vld [vmem:[%s289 + $0xd8] sm:$0xf]
        %v1970 = vld [vmem:[%s289 + $0xdc] sm:$0xf]
        %v1971 = vld [vmem:[%s289 + $0xe0] sm:$0xf]
        %v1972 = vld [vmem:[%s289 + $0xe4] sm:$0xf]
        %v1973 = vld [vmem:[%s289 + $0xe8] sm:$0xf]
        %v1974 = vld [vmem:[%s289 + $0xec] sm:$0xf]
        %v1975 = vld [vmem:[%s289 + $0xf0] sm:$0xf]
        %v1976 = vld [vmem:[%s289 + $0xf4] sm:$0xf]
        %v1977 = vld [vmem:[%s289 + $0xf8] sm:$0xf]
        %v1978 = vld [vmem:[%s289 + $0xfc] sm:$0xf]
        %v1979 = vld [vmem:[%s289 + $0x100] sm:$0xf]
        %v1980 = vld [vmem:[%s289 + $0x104] sm:$0xf]
        %v1981 = vld [vmem:[%s289 + $0x108] sm:$0xf]
        %v1982 = vld [vmem:[%s289 + $0x10c] sm:$0xf]
        %v1983 = vld [vmem:[%s289 + $0x110] sm:$0xf]
        %v1984 = vld [vmem:[%s289 + $0x114] sm:$0xf]
        %v1985 = vld [vmem:[%s289 + $0x118] sm:$0xf]
        %v1986 = vld [vmem:[%s289 + $0x11c] sm:$0xf]
        %v1987 = vld [vmem:[%s289 + $0x120] sm:$0xf]
        %v1988 = vld [vmem:[%s289 + $0x124] sm:$0xf]
        %v1989 = vld [vmem:[%s289 + $0x128] sm:$0xf]
        %v1990 = vld [vmem:[%s289 + $0x12c] sm:$0xf]
        %v1991 = vld [vmem:[%s289 + $0x130] sm:$0xf]
        %v1992 = vld [vmem:[%s289 + $0x134] sm:$0xf]
        %v1993 = vld [vmem:[%s289 + $0x138] sm:$0xf]
        %v1994 = vld [vmem:[%s289 + $0x13c] sm:$0xf]
        %v1995 = vld [vmem:[%s289 + $0x140] sm:$0xf]
        %v1996 = vld [vmem:[%s289 + $0x144] sm:$0xf]
        %v1997 = vld [vmem:[%s289 + $0x148] sm:$0xf]
        %v1998 = vld [vmem:[%s289 + $0x14c] sm:$0xf]
        %v1999 = vld [vmem:[%s289 + $0x150] sm:$0xf]
        %v2000 = vld [vmem:[%s289 + $0x154] sm:$0xf]
        %v2001 = vld [vmem:[%s289 + $0x158] sm:$0xf]
        %v2002 = vld [vmem:[%s289 + $0x15c] sm:$0xf]
        %v2003 = vld [vmem:[%s289 + $0x160] sm:$0xf]
        %v2004 = vld [vmem:[%s289 + $0x164] sm:$0xf]
        %v2005 = vld [vmem:[%s289 + $0x168] sm:$0xf]
        %v2006 = vld [vmem:[%s289 + $0x16c] sm:$0xf]
        %v2007 = vld [vmem:[%s289 + $0x170] sm:$0xf]
        %v2008 = vld [vmem:[%s289 + $0x174] sm:$0xf]
        %v2009 = vld [vmem:[%s289 + $0x178] sm:$0xf]
        %v2010 = vld [vmem:[%s289 + $0x17c] sm:$0xf]
        %v2011 = vld [vmem:[%s289 + $0x180] sm:$0xf]
        %v2012 = vld [vmem:[%s289 + $0x184] sm:$0xf]
        %v2013 = vld [vmem:[%s289 + $0x188] sm:$0xf]
        %v2014 = vld [vmem:[%s289 + $0x18c] sm:$0xf]
        %v2015 = vld [vmem:[%s289 + $0x190] sm:$0xf]
        %v2016 = vld [vmem:[%s289 + $0x194] sm:$0xf]
        %v2017 = vld [vmem:[%s289 + $0x198] sm:$0xf]
        %v2018 = vld [vmem:[%s289 + $0x19c] sm:$0xf]
        %v2019 = vld [vmem:[%s289 + $0x1a0] sm:$0xf]
        %v2020 = vld [vmem:[%s289 + $0x1a4] sm:$0xf]
        %v2021 = vld [vmem:[%s289 + $0x1a8] sm:$0xf]
        %v2022 = vld [vmem:[%s289 + $0x1ac] sm:$0xf]
        %v2023 = vld [vmem:[%s289 + $0x1b0] sm:$0xf]
        %v2024 = vld [vmem:[%s289 + $0x1b4] sm:$0xf]
        %v2025 = vld [vmem:[%s289 + $0x1b8] sm:$0xf]
        %v2026 = vld [vmem:[%s289 + $0x1bc] sm:$0xf]
        %v2027 = vld [vmem:[%s289 + $0x1c0] sm:$0xf]
        %v2028 = vld [vmem:[%s289 + $0x1c4] sm:$0xf]
        %v2029 = vld [vmem:[%s289 + $0x1c8] sm:$0xf]
        %v2030 = vld [vmem:[%s289 + $0x1cc] sm:$0xf]
        %v2031 = vld [vmem:[%s289 + $0x1d0] sm:$0xf]
        %v2032 = vld [vmem:[%s289 + $0x1d4] sm:$0xf]
        %v2033 = vld [vmem:[%s289 + $0x1d8] sm:$0xf]
        %v2034 = vld [vmem:[%s289 + $0x1dc] sm:$0xf]
        %v2035 = vld [vmem:[%s289 + $0x1e0] sm:$0xf]
        %v2036 = vld [vmem:[%s289 + $0x1e4] sm:$0xf]
        %v2037 = vld [vmem:[%s289 + $0x1e8] sm:$0xf]
        %v2038 = vld [vmem:[%s289 + $0x1ec] sm:$0xf]
        %v2039 = vld [vmem:[%s289 + $0x1f0] sm:$0xf]
        %v2040 = vld [vmem:[%s289 + $0x1f4] sm:$0xf]
        %v2041 = vld [vmem:[%s289 + $0x1f8] sm:$0xf]
        %v2042 = vld [vmem:[%s289 + $0x1fc] sm:$0xf]
        %v2043 = vld [vmem:[%s289 + $0x200] sm:$0xf]
        %v2044 = vld [vmem:[%s289 + $0x204] sm:$0xf]
        %v2045 = vld [vmem:[%s289 + $0x208] sm:$0xf]
        %v2046 = vld [vmem:[%s289 + $0x20c] sm:$0xf]
        %v2047 = vld [vmem:[%s289 + $0x210] sm:$0xf]
        %v2048 = vld [vmem:[%s289 + $0x214] sm:$0xf]
        %v2049 = vld [vmem:[%s289 + $0x218] sm:$0xf]
        %v2050 = vld [vmem:[%s289 + $0x21c] sm:$0xf]
        %v2051 = vld [vmem:[%s289 + $0x220] sm:$0xf]
        %v2052 = vld [vmem:[%s289 + $0x224] sm:$0xf]
        %v2053 = vld [vmem:[%s289 + $0x228] sm:$0xf]
        %v2054 = vld [vmem:[%s289 + $0x22c] sm:$0xf]
        %v2055 = vld [vmem:[%s289 + $0x230] sm:$0xf]
        %v2056 = vld [vmem:[%s289 + $0x234] sm:$0xf]
        %v2057 = vld [vmem:[%s289 + $0x238] sm:$0xf]
        %v2058 = vld [vmem:[%s289 + $0x23c] sm:$0xf]
        %v2059 = vld [vmem:[%s289 + $0x240] sm:$0xf]
        %v2060 = vld [vmem:[%s289 + $0x244] sm:$0xf]
        %v2061 = vld [vmem:[%s289 + $0x248] sm:$0xf]
        %v2062 = vld [vmem:[%s289 + $0x24c] sm:$0xf]
        %v2063 = vld [vmem:[%s289 + $0x250] sm:$0xf]
        %v2064 = vld [vmem:[%s289 + $0x254] sm:$0xf]
        %v2065 = vld [vmem:[%s289 + $0x258] sm:$0xf]
        %v2066 = vld [vmem:[%s289 + $0x25c] sm:$0xf]
        %v2067 = vld [vmem:[%s289 + $0x260] sm:$0xf]
        %v2068 = vld [vmem:[%s289 + $0x264] sm:$0xf]
        %v2069 = vld [vmem:[%s289 + $0x268] sm:$0xf]
        %v2070 = vld [vmem:[%s289 + $0x26c] sm:$0xf]
        %v2071 = vld [vmem:[%s289 + $0x270] sm:$0xf]
        %v2072 = vld [vmem:[%s289 + $0x274] sm:$0xf]
        %v2073 = vld [vmem:[%s289 + $0x278] sm:$0xf]
        %v2074 = vld [vmem:[%s289 + $0x27c] sm:$0xf]
        %v2075 = vld [vmem:[%s289 + $0x280] sm:$0xf]
        %v2076 = vld [vmem:[%s289 + $0x284] sm:$0xf]
        %v2077 = vld [vmem:[%s289 + $0x288] sm:$0xf]
        %v2078 = vld [vmem:[%s289 + $0x28c] sm:$0xf]
        %v2079 = vld [vmem:[%s289 + $0x290] sm:$0xf]
        %v2080 = vld [vmem:[%s289 + $0x294] sm:$0xf]
        %v2081 = vld [vmem:[%s289 + $0x298] sm:$0xf]
        %v2082 = vld [vmem:[%s289 + $0x29c] sm:$0xf]
        %v2083 = vld [vmem:[%s289 + $0x2a0] sm:$0xf]
        %v2084 = vld [vmem:[%s289 + $0x2a4] sm:$0xf]
        %v2085 = vld [vmem:[%s289 + $0x2a8] sm:$0xf]
        %v2086 = vld [vmem:[%s289 + $0x2ac] sm:$0xf]
        %v2087 = vld [vmem:[%s289 + $0x2b0] sm:$0xf]
        %v2088 = vld [vmem:[%s289 + $0x2b4] sm:$0xf]
        %v2089 = vld [vmem:[%s289 + $0x2b8] sm:$0xf]
        %v2090 = vld [vmem:[%s289 + $0x2bc] sm:$0xf]
        %v2091 = vld [vmem:[%s289 + $0x2c0] sm:$0xf]
        %v2092 = vld [vmem:[%s289 + $0x2c4] sm:$0xf]
        %v2093 = vld [vmem:[%s289 + $0x2c8] sm:$0xf]
        %v2094 = vld [vmem:[%s289 + $0x2cc] sm:$0xf]
        %v2095 = vld [vmem:[%s289 + $0x2d0] sm:$0xf]
        %v2096 = vld [vmem:[%s289 + $0x2d4] sm:$0xf]
        %v2097 = vld [vmem:[%s289 + $0x2d8] sm:$0xf]
        %v2098 = vld [vmem:[%s289 + $0x2dc] sm:$0xf]
        %v2099 = vld [vmem:[%s289 + $0x2e0] sm:$0xf]
        %v2100 = vld [vmem:[%s289 + $0x2e4] sm:$0xf]
        %v2101 = vld [vmem:[%s289 + $0x2e8] sm:$0xf]
        %v2102 = vld [vmem:[%s289 + $0x2ec] sm:$0xf]
        %v2103 = vld [vmem:[%s289 + $0x2f0] sm:$0xf]
        %v2104 = vld [vmem:[%s289 + $0x2f4] sm:$0xf]
        %v2105 = vld [vmem:[%s289 + $0x2f8] sm:$0xf]
        %v2106 = vld [vmem:[%s289 + $0x2fc] sm:$0xf]
        %v2107 = vld [vmem:[%s289 + $0x300] sm:$0xf]
        %v2108 = vld [vmem:[%s289 + $0x304] sm:$0xf]
        %v2109 = vld [vmem:[%s289 + $0x308] sm:$0xf]
        %v2110 = vld [vmem:[%s289 + $0x30c] sm:$0xf]
        %v2111 = vld [vmem:[%s289 + $0x310] sm:$0xf]
        %v2112 = vld [vmem:[%s289 + $0x314] sm:$0xf]
        %v2113 = vld [vmem:[%s289 + $0x318] sm:$0xf]
        %v2114 = vld [vmem:[%s289 + $0x31c] sm:$0xf]
        %v2115 = vld [vmem:[%s289 + $0x320] sm:$0xf]
        %v2116 = vld [vmem:[%s289 + $0x324] sm:$0xf]
        %v2117 = vld [vmem:[%s289 + $0x328] sm:$0xf]
        %v2118 = vld [vmem:[%s289 + $0x32c] sm:$0xf]
        %v2119 = vld [vmem:[%s289 + $0x330] sm:$0xf]
        %v2120 = vld [vmem:[%s289 + $0x334] sm:$0xf]
        %v2121 = vld [vmem:[%s289 + $0x338] sm:$0xf]
        %v2122 = vld [vmem:[%s289 + $0x33c] sm:$0xf]
        %v2123 = vld [vmem:[%s289 + $0x340] sm:$0xf]
        %v2124 = vld [vmem:[%s289 + $0x344] sm:$0xf]
        %v2125 = vld [vmem:[%s289 + $0x348] sm:$0xf]
        %v2126 = vld [vmem:[%s289 + $0x34c] sm:$0xf]
        %v2127 = vld [vmem:[%s289 + $0x350] sm:$0xf]
        %v2128 = vld [vmem:[%s289 + $0x354] sm:$0xf]
        %v2129 = vld [vmem:[%s289 + $0x358] sm:$0xf]
        %v2130 = vld [vmem:[%s289 + $0x35c] sm:$0xf]
        %v2131 = vld [vmem:[%s289 + $0x360] sm:$0xf]
        %v2132 = vld [vmem:[%s289 + $0x364] sm:$0xf]
        %v2133 = vld [vmem:[%s289 + $0x368] sm:$0xf]
        %v2134 = vld [vmem:[%s289 + $0x36c] sm:$0xf]
        %v2135 = vld [vmem:[%s289 + $0x370] sm:$0xf]
        %v2136 = vld [vmem:[%s289 + $0x374] sm:$0xf]
        %v2137 = vld [vmem:[%s289 + $0x378] sm:$0xf]
        %v2138 = vld [vmem:[%s289 + $0x37c] sm:$0xf]
        %v2139 = vld [vmem:[%s289 + $0x380] sm:$0xf]
        %v2140 = vld [vmem:[%s289 + $0x384] sm:$0xf]
        %v2141 = vld [vmem:[%s289 + $0x388] sm:$0xf]
        %v2142 = vld [vmem:[%s289 + $0x38c] sm:$0xf]
        %v2143 = vld [vmem:[%s289 + $0x390] sm:$0xf]
        %v2144 = vld [vmem:[%s289 + $0x394] sm:$0xf]
        %v2145 = vld [vmem:[%s289 + $0x398] sm:$0xf]
        %v2146 = vld [vmem:[%s289 + $0x39c] sm:$0xf]
        %v2147 = vld [vmem:[%s289 + $0x3a0] sm:$0xf]
        %v2148 = vld [vmem:[%s289 + $0x3a4] sm:$0xf]
        %v2149 = vld [vmem:[%s289 + $0x3a8] sm:$0xf]
        %v2150 = vld [vmem:[%s289 + $0x3ac] sm:$0xf]
        %v2151 = vld [vmem:[%s289 + $0x3b0] sm:$0xf]
        %v2152 = vld [vmem:[%s289 + $0x3b4] sm:$0xf]
        %v2153 = vld [vmem:[%s289 + $0x3b8] sm:$0xf]
        %v2154 = vld [vmem:[%s289 + $0x3bc] sm:$0xf]
        %v2155 = vld [vmem:[%s289 + $0x3c0] sm:$0xf]
        %v2156 = vld [vmem:[%s289 + $0x3c4] sm:$0xf]
        %v2157 = vld [vmem:[%s289 + $0x3c8] sm:$0xf]
        %v2158 = vld [vmem:[%s289 + $0x3cc] sm:$0xf]
        %v2159 = vld [vmem:[%s289 + $0x3d0] sm:$0xf]
        %v2160 = vld [vmem:[%s289 + $0x3d4] sm:$0xf]
        %v2161 = vld [vmem:[%s289 + $0x3d8] sm:$0xf]
        %v2162 = vld [vmem:[%s289 + $0x3dc] sm:$0xf]
        %v2163 = vld [vmem:[%s289 + $0x3e0] sm:$0xf]
        %v2164 = vld [vmem:[%s289 + $0x3e4] sm:$0xf]
        %v2165 = vld [vmem:[%s289 + $0x3e8] sm:$0xf]
        %v2166 = vld [vmem:[%s289 + $0x3ec] sm:$0xf]
        %v2167 = vld [vmem:[%s289 + $0x3f0] sm:$0xf]
        %v2168 = vld [vmem:[%s289 + $0x3f4] sm:$0xf]
        %v2169 = vld [vmem:[%s289 + $0x3f8] sm:$0xf]
        %v2170 = vld [vmem:[%s289 + $0x3fc] sm:$0xf]
        %v2427 = vunpack.c.l.b16 %v1915
        %v2428 = vunpack.c.l.b16 %v1916
        %v2429 = vunpack.c.l.b16 %v1917
        %v2430 = vunpack.c.l.b16 %v1918
        %v2431 = vunpack.c.l.b16 %v1919
        %v2432 = vunpack.c.l.b16 %v1920
        %v2433 = vunpack.c.l.b16 %v1921
        %v2434 = vunpack.c.l.b16 %v1922
        %v2435 = vunpack.c.l.b16 %v1923
        %v2436 = vunpack.c.l.b16 %v1924
        %v2437 = vunpack.c.l.b16 %v1925
        %v2438 = vunpack.c.l.b16 %v1926
        %v2439 = vunpack.c.l.b16 %v1927
        %v2440 = vunpack.c.l.b16 %v1928
        %v2441 = vunpack.c.l.b16 %v1929
        %v2442 = vunpack.c.l.b16 %v1930
        %v2443 = vunpack.c.l.b16 %v1931
        %v2444 = vunpack.c.l.b16 %v1932
        %v2445 = vunpack.c.l.b16 %v1933
        %v2446 = vunpack.c.l.b16 %v1934
        %v2447 = vunpack.c.l.b16 %v1935
        %v2448 = vunpack.c.l.b16 %v1936
        %v2449 = vunpack.c.l.b16 %v1937
        %v2450 = vunpack.c.l.b16 %v1938
        %v2451 = vunpack.c.l.b16 %v1939
        %v2452 = vunpack.c.l.b16 %v1940
        %v2453 = vunpack.c.l.b16 %v1941
        %v2454 = vunpack.c.l.b16 %v1942
        %v2455 = vunpack.c.l.b16 %v1943
        %v2456 = vunpack.c.l.b16 %v1944
        %v2457 = vunpack.c.l.b16 %v1945
        %v2458 = vunpack.c.l.b16 %v1946
        %v2459 = vunpack.c.l.b16 %v1947
        %v2460 = vunpack.c.l.b16 %v1948
        %v2461 = vunpack.c.l.b16 %v1949
        %v2462 = vunpack.c.l.b16 %v1950
        %v2463 = vunpack.c.l.b16 %v1951
        %v2464 = vunpack.c.l.b16 %v1952
        %v2465 = vunpack.c.l.b16 %v1953
        %v2466 = vunpack.c.l.b16 %v1954
        %v2467 = vunpack.c.l.b16 %v1955
        %v2468 = vunpack.c.l.b16 %v1956
        %v2469 = vunpack.c.l.b16 %v1957
        %v2470 = vunpack.c.l.b16 %v1958
        %v2471 = vunpack.c.l.b16 %v1959
        %v2472 = vunpack.c.l.b16 %v1960
        %v2473 = vunpack.c.l.b16 %v1961
        %v2474 = vunpack.c.l.b16 %v1962
        %v2475 = vunpack.c.l.b16 %v1963
        %v2476 = vunpack.c.l.b16 %v1964
        %v2477 = vunpack.c.l.b16 %v1965
        %v2478 = vunpack.c.l.b16 %v1966
        %v2479 = vunpack.c.l.b16 %v1967
        %v2480 = vunpack.c.l.b16 %v1968
        %v2481 = vunpack.c.l.b16 %v1969
        %v2482 = vunpack.c.l.b16 %v1970
        %v2483 = vunpack.c.l.b16 %v1971
        %v2484 = vunpack.c.l.b16 %v1972
        %v2485 = vunpack.c.l.b16 %v1973
        %v2486 = vunpack.c.l.b16 %v1974
        %v2487 = vunpack.c.l.b16 %v1975
        %v2488 = vunpack.c.l.b16 %v1976
        %v2489 = vunpack.c.l.b16 %v1977
        %v2490 = vunpack.c.l.b16 %v1978
        %v2491 = vunpack.c.l.b16 %v1979
        %v2492 = vunpack.c.l.b16 %v1980
        %v2493 = vunpack.c.l.b16 %v1981
        %v2494 = vunpack.c.l.b16 %v1982
        %v2495 = vunpack.c.l.b16 %v1983
        %v2496 = vunpack.c.l.b16 %v1984
        %v2497 = vunpack.c.l.b16 %v1985
        %v2498 = vunpack.c.l.b16 %v1986
        %v2499 = vunpack.c.l.b16 %v1987
        %v2500 = vunpack.c.l.b16 %v1988
        %v2501 = vunpack.c.l.b16 %v1989
        %v2502 = vunpack.c.l.b16 %v1990
        %v2503 = vunpack.c.l.b16 %v1991
        %v2504 = vunpack.c.l.b16 %v1992
        %v2505 = vunpack.c.l.b16 %v1993
        %v2506 = vunpack.c.l.b16 %v1994
        %v2507 = vunpack.c.l.b16 %v1995
        %v2508 = vunpack.c.l.b16 %v1996
        %v2509 = vunpack.c.l.b16 %v1997
        %v2510 = vunpack.c.l.b16 %v1998
        %v2511 = vunpack.c.l.b16 %v1999
        %v2512 = vunpack.c.l.b16 %v2000
        %v2513 = vunpack.c.l.b16 %v2001
        %v2514 = vunpack.c.l.b16 %v2002
        %v2515 = vunpack.c.l.b16 %v2003
        %v2516 = vunpack.c.l.b16 %v2004
        %v2517 = vunpack.c.l.b16 %v2005
        %v2518 = vunpack.c.l.b16 %v2006
        %v2519 = vunpack.c.l.b16 %v2007
        %v2520 = vunpack.c.l.b16 %v2008
        %v2521 = vunpack.c.l.b16 %v2009
        %v2522 = vunpack.c.l.b16 %v2010
        %v2523 = vunpack.c.l.b16 %v2011
        %v2524 = vunpack.c.l.b16 %v2012
        %v2525 = vunpack.c.l.b16 %v2013
        %v2526 = vunpack.c.l.b16 %v2014
        %v2527 = vunpack.c.l.b16 %v2015
        %v2528 = vunpack.c.l.b16 %v2016
        %v2529 = vunpack.c.l.b16 %v2017
        %v2530 = vunpack.c.l.b16 %v2018
        %v2531 = vunpack.c.l.b16 %v2019
        %v2532 = vunpack.c.l.b16 %v2020
        %v2533 = vunpack.c.l.b16 %v2021
        %v2534 = vunpack.c.l.b16 %v2022
        %v2535 = vunpack.c.l.b16 %v2023
        %v2536 = vunpack.c.l.b16 %v2024
        %v2537 = vunpack.c.l.b16 %v2025
        %v2538 = vunpack.c.l.b16 %v2026
        %v2539 = vunpack.c.l.b16 %v2027
        %v2540 = vunpack.c.l.b16 %v2028
        %v2541 = vunpack.c.l.b16 %v2029
        %v2542 = vunpack.c.l.b16 %v2030
        %v2543 = vunpack.c.l.b16 %v2031
        %v2544 = vunpack.c.l.b16 %v2032
        %v2545 = vunpack.c.l.b16 %v2033
        %v2546 = vunpack.c.l.b16 %v2034
        %v2547 = vunpack.c.l.b16 %v2035
        %v2548 = vunpack.c.l.b16 %v2036
        %v2549 = vunpack.c.l.b16 %v2037
        %v2550 = vunpack.c.l.b16 %v2038
        %v2551 = vunpack.c.l.b16 %v2039
        %v2552 = vunpack.c.l.b16 %v2040
        %v2553 = vunpack.c.l.b16 %v2041
        %v2554 = vunpack.c.l.b16 %v2042
        %v2555 = vunpack.c.l.b16 %v2043
        %v2556 = vunpack.c.l.b16 %v2044
        %v2557 = vunpack.c.l.b16 %v2045
        %v2558 = vunpack.c.l.b16 %v2046
        %v2559 = vunpack.c.l.b16 %v2047
        %v2560 = vunpack.c.l.b16 %v2048
        %v2561 = vunpack.c.l.b16 %v2049
        %v2562 = vunpack.c.l.b16 %v2050
        %v2563 = vunpack.c.l.b16 %v2051
        %v2564 = vunpack.c.l.b16 %v2052
        %v2565 = vunpack.c.l.b16 %v2053
        %v2566 = vunpack.c.l.b16 %v2054
        %v2567 = vunpack.c.l.b16 %v2055
        %v2568 = vunpack.c.l.b16 %v2056
        %v2569 = vunpack.c.l.b16 %v2057
        %v2570 = vunpack.c.l.b16 %v2058
        %v2571 = vunpack.c.l.b16 %v2059
        %v2572 = vunpack.c.l.b16 %v2060
        %v2573 = vunpack.c.l.b16 %v2061
        %v2574 = vunpack.c.l.b16 %v2062
        %v2575 = vunpack.c.l.b16 %v2063
        %v2576 = vunpack.c.l.b16 %v2064
        %v2577 = vunpack.c.l.b16 %v2065
        %v2578 = vunpack.c.l.b16 %v2066
        %v2579 = vunpack.c.l.b16 %v2067
        %v2580 = vunpack.c.l.b16 %v2068
        %v2581 = vunpack.c.l.b16 %v2069
        %v2582 = vunpack.c.l.b16 %v2070
        %v2583 = vunpack.c.l.b16 %v2071
        %v2584 = vunpack.c.l.b16 %v2072
        %v2585 = vunpack.c.l.b16 %v2073
        %v2586 = vunpack.c.l.b16 %v2074
        %v2587 = vunpack.c.l.b16 %v2075
        %v2588 = vunpack.c.l.b16 %v2076
        %v2589 = vunpack.c.l.b16 %v2077
        %v2590 = vunpack.c.l.b16 %v2078
        %v2591 = vunpack.c.l.b16 %v2079
        %v2592 = vunpack.c.l.b16 %v2080
        %v2593 = vunpack.c.l.b16 %v2081
        %v2594 = vunpack.c.l.b16 %v2082
        %v2595 = vunpack.c.l.b16 %v2083
        %v2596 = vunpack.c.l.b16 %v2084
        %v2597 = vunpack.c.l.b16 %v2085
        %v2598 = vunpack.c.l.b16 %v2086
        %v2599 = vunpack.c.l.b16 %v2087
        %v2600 = vunpack.c.l.b16 %v2088
        %v2601 = vunpack.c.l.b16 %v2089
        %v2602 = vunpack.c.l.b16 %v2090
        %v2603 = vunpack.c.l.b16 %v2091
        %v2604 = vunpack.c.l.b16 %v2092
        %v2605 = vunpack.c.l.b16 %v2093
        %v2606 = vunpack.c.l.b16 %v2094
        %v2607 = vunpack.c.l.b16 %v2095
        %v2608 = vunpack.c.l.b16 %v2096
        %v2609 = vunpack.c.l.b16 %v2097
        %v2610 = vunpack.c.l.b16 %v2098
        %v2611 = vunpack.c.l.b16 %v2099
        %v2612 = vunpack.c.l.b16 %v2100
        %v2613 = vunpack.c.l.b16 %v2101
        %v2614 = vunpack.c.l.b16 %v2102
        %v2615 = vunpack.c.l.b16 %v2103
        %v2616 = vunpack.c.l.b16 %v2104
        %v2617 = vunpack.c.l.b16 %v2105
        %v2618 = vunpack.c.l.b16 %v2106
        %v2619 = vunpack.c.l.b16 %v2107
        %v2620 = vunpack.c.l.b16 %v2108
        %v2621 = vunpack.c.l.b16 %v2109
        %v2622 = vunpack.c.l.b16 %v2110
        %v2623 = vunpack.c.l.b16 %v2111
        %v2624 = vunpack.c.l.b16 %v2112
        %v2625 = vunpack.c.l.b16 %v2113
        %v2626 = vunpack.c.l.b16 %v2114
        %v2627 = vunpack.c.l.b16 %v2115
        %v2628 = vunpack.c.l.b16 %v2116
        %v2629 = vunpack.c.l.b16 %v2117
        %v2630 = vunpack.c.l.b16 %v2118
        %v2631 = vunpack.c.l.b16 %v2119
        %v2632 = vunpack.c.l.b16 %v2120
        %v2633 = vunpack.c.l.b16 %v2121
        %v2634 = vunpack.c.l.b16 %v2122
        %v2635 = vunpack.c.l.b16 %v2123
        %v2636 = vunpack.c.l.b16 %v2124
        %v2637 = vunpack.c.l.b16 %v2125
        %v2638 = vunpack.c.l.b16 %v2126
        %v2639 = vunpack.c.l.b16 %v2127
        %v2640 = vunpack.c.l.b16 %v2128
        %v2641 = vunpack.c.l.b16 %v2129
        %v2642 = vunpack.c.l.b16 %v2130
        %v2643 = vunpack.c.l.b16 %v2131
        %v2644 = vunpack.c.l.b16 %v2132
        %v2645 = vunpack.c.l.b16 %v2133
        %v2646 = vunpack.c.l.b16 %v2134
        %v2647 = vunpack.c.l.b16 %v2135
        %v2648 = vunpack.c.l.b16 %v2136
        %v2649 = vunpack.c.l.b16 %v2137
        %v2650 = vunpack.c.l.b16 %v2138
        %v2651 = vunpack.c.l.b16 %v2139
        %v2652 = vunpack.c.l.b16 %v2140
        %v2653 = vunpack.c.l.b16 %v2141
        %v2654 = vunpack.c.l.b16 %v2142
        %v2655 = vunpack.c.l.b16 %v2143
        %v2656 = vunpack.c.l.b16 %v2144
        %v2657 = vunpack.c.l.b16 %v2145
        %v2658 = vunpack.c.l.b16 %v2146
        %v2659 = vunpack.c.l.b16 %v2147
        %v2660 = vunpack.c.l.b16 %v2148
        %v2661 = vunpack.c.l.b16 %v2149
        %v2662 = vunpack.c.l.b16 %v2150
        %v2663 = vunpack.c.l.b16 %v2151
        %v2664 = vunpack.c.l.b16 %v2152
        %v2665 = vunpack.c.l.b16 %v2153
        %v2666 = vunpack.c.l.b16 %v2154
        %v2667 = vunpack.c.l.b16 %v2155
        %v2668 = vunpack.c.l.b16 %v2156
        %v2669 = vunpack.c.l.b16 %v2157
        %v2670 = vunpack.c.l.b16 %v2158
        %v2671 = vunpack.c.l.b16 %v2159
        %v2672 = vunpack.c.l.b16 %v2160
        %v2673 = vunpack.c.l.b16 %v2161
        %v2674 = vunpack.c.l.b16 %v2162
        %v2675 = vunpack.c.l.b16 %v2163
        %v2676 = vunpack.c.l.b16 %v2164
        %v2677 = vunpack.c.l.b16 %v2165
        %v2678 = vunpack.c.l.b16 %v2166
        %v2679 = vunpack.c.l.b16 %v2167
        %v2680 = vunpack.c.l.b16 %v2168
        %v2681 = vunpack.c.l.b16 %v2169
        %v2682 = vunpack.c.l.b16 %v2170
        %v2683 = vpack.c.b16 %v2428, %v2427
        %v2684 = vpack.c.b16 %v2430, %v2429
        %v2685 = vpack.c.b16 %v2432, %v2431
        %v2686 = vpack.c.b16 %v2434, %v2433
        %v2687 = vpack.c.b16 %v2436, %v2435
        %v2688 = vpack.c.b16 %v2438, %v2437
        %v2689 = vpack.c.b16 %v2440, %v2439
        %v2690 = vpack.c.b16 %v2442, %v2441
        %v2691 = vpack.c.b16 %v2444, %v2443
        %v2692 = vpack.c.b16 %v2446, %v2445
        %v2693 = vpack.c.b16 %v2448, %v2447
        %v2694 = vpack.c.b16 %v2450, %v2449
        %v2695 = vpack.c.b16 %v2452, %v2451
        %v2696 = vpack.c.b16 %v2454, %v2453
        %v2697 = vpack.c.b16 %v2456, %v2455
        %v2698 = vpack.c.b16 %v2458, %v2457
        %v2699 = vpack.c.b16 %v2460, %v2459
        %v2700 = vpack.c.b16 %v2462, %v2461
        %v2701 = vpack.c.b16 %v2464, %v2463
        %v2702 = vpack.c.b16 %v2466, %v2465
        %v2703 = vpack.c.b16 %v2468, %v2467
        %v2704 = vpack.c.b16 %v2470, %v2469
        %v2705 = vpack.c.b16 %v2472, %v2471
        %v2706 = vpack.c.b16 %v2474, %v2473
        %v2707 = vpack.c.b16 %v2476, %v2475
        %v2708 = vpack.c.b16 %v2478, %v2477
        %v2709 = vpack.c.b16 %v2480, %v2479
        %v2710 = vpack.c.b16 %v2482, %v2481
        %v2711 = vpack.c.b16 %v2484, %v2483
        %v2712 = vpack.c.b16 %v2486, %v2485
        %v2713 = vpack.c.b16 %v2488, %v2487
        %v2714 = vpack.c.b16 %v2490, %v2489
        %v2715 = vpack.c.b16 %v2492, %v2491
        %v2716 = vpack.c.b16 %v2494, %v2493
        %v2717 = vpack.c.b16 %v2496, %v2495
        %v2718 = vpack.c.b16 %v2498, %v2497
        %v2719 = vpack.c.b16 %v2500, %v2499
        %v2720 = vpack.c.b16 %v2502, %v2501
        %v2721 = vpack.c.b16 %v2504, %v2503
        %v2722 = vpack.c.b16 %v2506, %v2505
        %v2723 = vpack.c.b16 %v2508, %v2507
        %v2724 = vpack.c.b16 %v2510, %v2509
        %v2725 = vpack.c.b16 %v2512, %v2511
        %v2726 = vpack.c.b16 %v2514, %v2513
        %v2727 = vpack.c.b16 %v2516, %v2515
        %v2728 = vpack.c.b16 %v2518, %v2517
        %v2729 = vpack.c.b16 %v2520, %v2519
        %v2730 = vpack.c.b16 %v2522, %v2521
        %v2731 = vpack.c.b16 %v2524, %v2523
        %v2732 = vpack.c.b16 %v2526, %v2525
        %v2733 = vpack.c.b16 %v2528, %v2527
        %v2734 = vpack.c.b16 %v2530, %v2529
        %v2735 = vpack.c.b16 %v2532, %v2531
        %v2736 = vpack.c.b16 %v2534, %v2533
        %v2737 = vpack.c.b16 %v2536, %v2535
        %v2738 = vpack.c.b16 %v2538, %v2537
        %v2739 = vpack.c.b16 %v2540, %v2539
        %v2740 = vpack.c.b16 %v2542, %v2541
        %v2741 = vpack.c.b16 %v2544, %v2543
        %v2742 = vpack.c.b16 %v2546, %v2545
        %v2743 = vpack.c.b16 %v2548, %v2547
        %v2744 = vpack.c.b16 %v2550, %v2549
        %v2745 = vpack.c.b16 %v2552, %v2551
        %v2746 = vpack.c.b16 %v2554, %v2553
        %v2747 = vpack.c.b16 %v2556, %v2555
        %v2748 = vpack.c.b16 %v2558, %v2557
        %v2749 = vpack.c.b16 %v2560, %v2559
        %v2750 = vpack.c.b16 %v2562, %v2561
        %v2751 = vpack.c.b16 %v2564, %v2563
        %v2752 = vpack.c.b16 %v2566, %v2565
        %v2753 = vpack.c.b16 %v2568, %v2567
        %v2754 = vpack.c.b16 %v2570, %v2569
        %v2755 = vpack.c.b16 %v2572, %v2571
        %v2756 = vpack.c.b16 %v2574, %v2573
        %v2757 = vpack.c.b16 %v2576, %v2575
        %v2758 = vpack.c.b16 %v2578, %v2577
        %v2759 = vpack.c.b16 %v2580, %v2579
        %v2760 = vpack.c.b16 %v2582, %v2581
        %v2761 = vpack.c.b16 %v2584, %v2583
        %v2762 = vpack.c.b16 %v2586, %v2585
        %v2763 = vpack.c.b16 %v2588, %v2587
        %v2764 = vpack.c.b16 %v2590, %v2589
        %v2765 = vpack.c.b16 %v2592, %v2591
        %v2766 = vpack.c.b16 %v2594, %v2593
        %v2767 = vpack.c.b16 %v2596, %v2595
        %v2768 = vpack.c.b16 %v2598, %v2597
        %v2769 = vpack.c.b16 %v2600, %v2599
        %v2770 = vpack.c.b16 %v2602, %v2601
        %v2771 = vpack.c.b16 %v2604, %v2603
        %v2772 = vpack.c.b16 %v2606, %v2605
        %v2773 = vpack.c.b16 %v2608, %v2607
        %v2774 = vpack.c.b16 %v2610, %v2609
        %v2775 = vpack.c.b16 %v2612, %v2611
        %v2776 = vpack.c.b16 %v2614, %v2613
        %v2777 = vpack.c.b16 %v2616, %v2615
        %v2778 = vpack.c.b16 %v2618, %v2617
        %v2779 = vpack.c.b16 %v2620, %v2619
        %v2780 = vpack.c.b16 %v2622, %v2621
        %v2781 = vpack.c.b16 %v2624, %v2623
        %v2782 = vpack.c.b16 %v2626, %v2625
        %v2783 = vpack.c.b16 %v2628, %v2627
        %v2784 = vpack.c.b16 %v2630, %v2629
        %v2785 = vpack.c.b16 %v2632, %v2631
        %v2786 = vpack.c.b16 %v2634, %v2633
        %v2787 = vpack.c.b16 %v2636, %v2635
        %v2788 = vpack.c.b16 %v2638, %v2637
        %v2789 = vpack.c.b16 %v2640, %v2639
        %v2790 = vpack.c.b16 %v2642, %v2641
        %v2791 = vpack.c.b16 %v2644, %v2643
        %v2792 = vpack.c.b16 %v2646, %v2645
        %v2793 = vpack.c.b16 %v2648, %v2647
        %v2794 = vpack.c.b16 %v2650, %v2649
        %v2795 = vpack.c.b16 %v2652, %v2651
        %v2796 = vpack.c.b16 %v2654, %v2653
        %v2797 = vpack.c.b16 %v2656, %v2655
        %v2798 = vpack.c.b16 %v2658, %v2657
        %v2799 = vpack.c.b16 %v2660, %v2659
        %v2800 = vpack.c.b16 %v2662, %v2661
        %v2801 = vpack.c.b16 %v2664, %v2663
        %v2802 = vpack.c.b16 %v2666, %v2665
        %v2803 = vpack.c.b16 %v2668, %v2667
        %v2804 = vpack.c.b16 %v2670, %v2669
        %v2805 = vpack.c.b16 %v2672, %v2671
        %v2806 = vpack.c.b16 %v2674, %v2673
        %v2807 = vpack.c.b16 %v2676, %v2675
        %v2808 = vpack.c.b16 %v2678, %v2677
        %v2809 = vpack.c.b16 %v2680, %v2679
        %v2810 = vpack.c.b16 %v2682, %v2681
        %2939 = vmatprep.subr.bf16.mxu0 0
        %2940 = vmatpush1.bf16.msra.mxu0 %v2690
        %2941 = vmatprep.subr.bf16.mxu0 0
        %2942 = vmatpush1.bf16.msra.mxu0 %v2689
        %2943 = vmatprep.subr.bf16.mxu0 0
        %2944 = vmatpush1.bf16.msra.mxu0 %v2688
        %2945 = vmatprep.subr.bf16.mxu0 0
        %2946 = vmatpush1.bf16.msra.mxu0 %v2687
        %2947 = vmatprep.subr.bf16.mxu0 0
        %2948 = vmatpush1.bf16.msra.mxu0 %v2686
        %2949 = vmatprep.subr.bf16.mxu0 0
        %2950 = vmatpush1.bf16.msra.mxu0 %v2685
        %2951 = vmatprep.subr.bf16.mxu0 0
        %2952 = vmatpush1.bf16.msra.mxu0 %v2684
        %2953 = vmatprep.subr.bf16.mxu0 0
        %2954 = vmatpush1.bf16.msra.mxu0 %v2683
        %2955 = vmatprep.subr.bf16.mxu0 0
        %2956 = vmatpush2.bf16.msra.mxu0 %v2698
        %2957 = vmatprep.subr.bf16.mxu0 0
        %2958 = vmatpush2.bf16.msra.mxu0 %v2697
        %2959 = vmatprep.subr.bf16.mxu0 0
        %2960 = vmatpush2.bf16.msra.mxu0 %v2696
        %2961 = vmatprep.subr.bf16.mxu0 0
        %2962 = vmatpush2.bf16.msra.mxu0 %v2695
        %2963 = vmatprep.subr.bf16.mxu0 0
        %2964 = vmatpush2.bf16.msra.mxu0 %v2694
        %2965 = vmatprep.subr.bf16.mxu0 0
        %2966 = vmatpush2.bf16.msra.mxu0 %v2693
        %2967 = vmatprep.subr.bf16.mxu0 0
        %2968 = vmatpush2.bf16.msra.mxu0 %v2692
        %2969 = vmatprep.subr.bf16.mxu0 0
        %2970 = vmatpush2.bf16.msra.mxu0 %v2691
        %2971 = vmatprep.mubr.bf16.mxu0 %v1900
        %2972 = vmatmul.mubr.bf16.gmra.mxu0 %v1899
        %v2973 = vpop.f32.mrf.mxu0
        %v2974 = vadd.f32 0.0, %v2973
        %v2975 = vpop.f32.mrf.mxu0
        %v2976 = vpop.f32.mrf.mxu0
        %v2977 = vadd.f32 0.0, %v2976
        %v2978 = vpop.f32.mrf.mxu0
        %2979 = vdwg.mxu0
        %2980 = vmatprep.subr.bf16.mxu0 0
        %2981 = vmatpush1.bf16.msra.mxu0 %v2706
        %2982 = vmatprep.subr.bf16.mxu0 0
        %2983 = vmatpush1.bf16.msra.mxu0 %v2705
        %2984 = vmatprep.subr.bf16.mxu0 0
        %2985 = vmatpush1.bf16.msra.mxu0 %v2704
        %2986 = vmatprep.subr.bf16.mxu0 0
        %2987 = vmatpush1.bf16.msra.mxu0 %v2703
        %2988 = vmatprep.subr.bf16.mxu0 0
        %2989 = vmatpush1.bf16.msra.mxu0 %v2702
        %2990 = vmatprep.subr.bf16.mxu0 0
        %2991 = vmatpush1.bf16.msra.mxu0 %v2701
        %2992 = vmatprep.subr.bf16.mxu0 0
        %2993 = vmatpush1.bf16.msra.mxu0 %v2700
        %2994 = vmatprep.subr.bf16.mxu0 0
        %2995 = vmatpush1.bf16.msra.mxu0 %v2699
        %2996 = vmatprep.subr.bf16.mxu0 0
        %2997 = vmatpush2.bf16.msra.mxu0 %v2714
        %2998 = vmatprep.subr.bf16.mxu0 0
        %2999 = vmatpush2.bf16.msra.mxu0 %v2713
        %3000 = vmatprep.subr.bf16.mxu0 0
        %3001 = vmatpush2.bf16.msra.mxu0 %v2712
        %3002 = vmatprep.subr.bf16.mxu0 0
        %3003 = vmatpush2.bf16.msra.mxu0 %v2711
        %3004 = vmatprep.subr.bf16.mxu0 0
        %3005 = vmatpush2.bf16.msra.mxu0 %v2710
        %3006 = vmatprep.subr.bf16.mxu0 0
        %3007 = vmatpush2.bf16.msra.mxu0 %v2709
        %3008 = vmatprep.subr.bf16.mxu0 0
        %3009 = vmatpush2.bf16.msra.mxu0 %v2708
        %3010 = vmatprep.subr.bf16.mxu0 0
        %3011 = vmatpush2.bf16.msra.mxu0 %v2707
        %3012 = vmatprep.mubr.bf16.mxu0 %v1902
        %3013 = vmatmul.mubr.bf16.gmra.mxu0 %v1901
        %v3014 = vpop.f32.mrf.mxu0
        %v3015 = vadd.f32 %v2974, %v3014
        %v3016 = vpop.f32.mrf.mxu0
        %v3017 = vpop.f32.mrf.mxu0
        %v3018 = vadd.f32 %v2977, %v3017
        %v3019 = vpop.f32.mrf.mxu0
        %3020 = vdwg.mxu0
        %3021 = vmatprep.subr.bf16.mxu0 0
        %3022 = vmatpush1.bf16.msra.mxu0 %v2722
        %3023 = vmatprep.subr.bf16.mxu0 0
        %3024 = vmatpush1.bf16.msra.mxu0 %v2721
        %3025 = vmatprep.subr.bf16.mxu0 0
        %3026 = vmatpush1.bf16.msra.mxu0 %v2720
        %3027 = vmatprep.subr.bf16.mxu0 0
        %3028 = vmatpush1.bf16.msra.mxu0 %v2719
        %3029 = vmatprep.subr.bf16.mxu0 0
        %3030 = vmatpush1.bf16.msra.mxu0 %v2718
        %3031 = vmatprep.subr.bf16.mxu0 0
        %3032 = vmatpush1.bf16.msra.mxu0 %v2717
        %3033 = vmatprep.subr.bf16.mxu0 0
        %3034 = vmatpush1.bf16.msra.mxu0 %v2716
        %3035 = vmatprep.subr.bf16.mxu0 0
        %3036 = vmatpush1.bf16.msra.mxu0 %v2715
        %3037 = vmatprep.subr.bf16.mxu0 0
        %3038 = vmatpush2.bf16.msra.mxu0 %v2730
        %3039 = vmatprep.subr.bf16.mxu0 0
        %3040 = vmatpush2.bf16.msra.mxu0 %v2729
        %3041 = vmatprep.subr.bf16.mxu0 0
        %3042 = vmatpush2.bf16.msra.mxu0 %v2728
        %3043 = vmatprep.subr.bf16.mxu0 0
        %3044 = vmatpush2.bf16.msra.mxu0 %v2727
        %3045 = vmatprep.subr.bf16.mxu0 0
        %3046 = vmatpush2.bf16.msra.mxu0 %v2726
        %3047 = vmatprep.subr.bf16.mxu0 0
        %3048 = vmatpush2.bf16.msra.mxu0 %v2725
        %3049 = vmatprep.subr.bf16.mxu0 0
        %3050 = vmatpush2.bf16.msra.mxu0 %v2724
        %3051 = vmatprep.subr.bf16.mxu0 0
        %3052 = vmatpush2.bf16.msra.mxu0 %v2723
        %3053 = vmatprep.mubr.bf16.mxu0 %v1904
        %3054 = vmatmul.mubr.bf16.gmra.mxu0 %v1903
        %v3055 = vpop.f32.mrf.mxu0
        %v3056 = vadd.f32 %v3015, %v3055
        %v3057 = vpop.f32.mrf.mxu0
        %v3058 = vpop.f32.mrf.mxu0
        %v3059 = vadd.f32 %v3018, %v3058
        %v3060 = vpop.f32.mrf.mxu0
        %3061 = vdwg.mxu0
        %3062 = vmatprep.subr.bf16.mxu0 0
        %3063 = vmatpush1.bf16.msra.mxu0 %v2738
        %3064 = vmatprep.subr.bf16.mxu0 0
        %3065 = vmatpush1.bf16.msra.mxu0 %v2737
        %3066 = vmatprep.subr.bf16.mxu0 0
        %3067 = vmatpush1.bf16.msra.mxu0 %v2736
        %3068 = vmatprep.subr.bf16.mxu0 0
        %3069 = vmatpush1.bf16.msra.mxu0 %v2735
        %3070 = vmatprep.subr.bf16.mxu0 0
        %3071 = vmatpush1.bf16.msra.mxu0 %v2734
        %3072 = vmatprep.subr.bf16.mxu0 0
        %3073 = vmatpush1.bf16.msra.mxu0 %v2733
        %3074 = vmatprep.subr.bf16.mxu0 0
        %3075 = vmatpush1.bf16.msra.mxu0 %v2732
        %3076 = vmatprep.subr.bf16.mxu0 0
        %3077 = vmatpush1.bf16.msra.mxu0 %v2731
        %3078 = vmatprep.subr.bf16.mxu0 0
        %3079 = vmatpush2.bf16.msra.mxu0 %v2746
        %3080 = vmatprep.subr.bf16.mxu0 0
        %3081 = vmatpush2.bf16.msra.mxu0 %v2745
        %3082 = vmatprep.subr.bf16.mxu0 0
        %3083 = vmatpush2.bf16.msra.mxu0 %v2744
        %3084 = vmatprep.subr.bf16.mxu0 0
        %3085 = vmatpush2.bf16.msra.mxu0 %v2743
        %3086 = vmatprep.subr.bf16.mxu0 0
        %3087 = vmatpush2.bf16.msra.mxu0 %v2742
        %3088 = vmatprep.subr.bf16.mxu0 0
        %3089 = vmatpush2.bf16.msra.mxu0 %v2741
        %3090 = vmatprep.subr.bf16.mxu0 0
        %3091 = vmatpush2.bf16.msra.mxu0 %v2740
        %3092 = vmatprep.subr.bf16.mxu0 0
        %3093 = vmatpush2.bf16.msra.mxu0 %v2739
        %3094 = vmatprep.mubr.bf16.mxu0 %v1906
        %3095 = vmatmul.mubr.bf16.gmra.mxu0 %v1905
        %v3096 = vpop.f32.mrf.mxu0
        %v3097 = vadd.f32 %v3056, %v3096
        %v3098 = vpop.f32.mrf.mxu0
        %v3099 = vpop.f32.mrf.mxu0
        %v3100 = vadd.f32 %v3059, %v3099
        %v3101 = vpop.f32.mrf.mxu0
        %3102 = vdwg.mxu0
        %3103 = vmatprep.subr.bf16.mxu0 0
        %3104 = vmatpush1.bf16.msra.mxu0 %v2754
        %3105 = vmatprep.subr.bf16.mxu0 0
        %3106 = vmatpush1.bf16.msra.mxu0 %v2753
        %3107 = vmatprep.subr.bf16.mxu0 0
        %3108 = vmatpush1.bf16.msra.mxu0 %v2752
        %3109 = vmatprep.subr.bf16.mxu0 0
        %3110 = vmatpush1.bf16.msra.mxu0 %v2751
        %3111 = vmatprep.subr.bf16.mxu0 0
        %3112 = vmatpush1.bf16.msra.mxu0 %v2750
        %3113 = vmatprep.subr.bf16.mxu0 0
        %3114 = vmatpush1.bf16.msra.mxu0 %v2749
        %3115 = vmatprep.subr.bf16.mxu0 0
        %3116 = vmatpush1.bf16.msra.mxu0 %v2748
        %3117 = vmatprep.subr.bf16.mxu0 0
        %3118 = vmatpush1.bf16.msra.mxu0 %v2747
        %3119 = vmatprep.subr.bf16.mxu0 0
        %3120 = vmatpush2.bf16.msra.mxu0 %v2762
        %3121 = vmatprep.subr.bf16.mxu0 0
        %3122 = vmatpush2.bf16.msra.mxu0 %v2761
        %3123 = vmatprep.subr.bf16.mxu0 0
        %3124 = vmatpush2.bf16.msra.mxu0 %v2760
        %3125 = vmatprep.subr.bf16.mxu0 0
        %3126 = vmatpush2.bf16.msra.mxu0 %v2759
        %3127 = vmatprep.subr.bf16.mxu0 0
        %3128 = vmatpush2.bf16.msra.mxu0 %v2758
        %3129 = vmatprep.subr.bf16.mxu0 0
        %3130 = vmatpush2.bf16.msra.mxu0 %v2757
        %3131 = vmatprep.subr.bf16.mxu0 0
        %3132 = vmatpush2.bf16.msra.mxu0 %v2756
        %3133 = vmatprep.subr.bf16.mxu0 0
        %3134 = vmatpush2.bf16.msra.mxu0 %v2755
        %3135 = vmatprep.mubr.bf16.mxu0 %v1908
        %3136 = vmatmul.mubr.bf16.gmra.mxu0 %v1907
        %v3137 = vpop.f32.mrf.mxu0
        %v3138 = vadd.f32 %v3097, %v3137
        %v3139 = vpop.f32.mrf.mxu0
        %v3140 = vpop.f32.mrf.mxu0
        %v3141 = vadd.f32 %v3100, %v3140
        %v3142 = vpop.f32.mrf.mxu0
        %3143 = vdwg.mxu0
        %3144 = vmatprep.subr.bf16.mxu0 0
        %3145 = vmatpush1.bf16.msra.mxu0 %v2770
        %3146 = vmatprep.subr.bf16.mxu0 0
        %3147 = vmatpush1.bf16.msra.mxu0 %v2769
        %3148 = vmatprep.subr.bf16.mxu0 0
        %3149 = vmatpush1.bf16.msra.mxu0 %v2768
        %3150 = vmatprep.subr.bf16.mxu0 0
        %3151 = vmatpush1.bf16.msra.mxu0 %v2767
        %3152 = vmatprep.subr.bf16.mxu0 0
        %3153 = vmatpush1.bf16.msra.mxu0 %v2766
        %3154 = vmatprep.subr.bf16.mxu0 0
        %3155 = vmatpush1.bf16.msra.mxu0 %v2765
        %3156 = vmatprep.subr.bf16.mxu0 0
        %3157 = vmatpush1.bf16.msra.mxu0 %v2764
        %3158 = vmatprep.subr.bf16.mxu0 0
        %3159 = vmatpush1.bf16.msra.mxu0 %v2763
        %3160 = vmatprep.subr.bf16.mxu0 0
        %3161 = vmatpush2.bf16.msra.mxu0 %v2778
        %3162 = vmatprep.subr.bf16.mxu0 0
        %3163 = vmatpush2.bf16.msra.mxu0 %v2777
        %3164 = vmatprep.subr.bf16.mxu0 0
        %3165 = vmatpush2.bf16.msra.mxu0 %v2776
        %3166 = vmatprep.subr.bf16.mxu0 0
        %3167 = vmatpush2.bf16.msra.mxu0 %v2775
        %3168 = vmatprep.subr.bf16.mxu0 0
        %3169 = vmatpush2.bf16.msra.mxu0 %v2774
        %3170 = vmatprep.subr.bf16.mxu0 0
        %3171 = vmatpush2.bf16.msra.mxu0 %v2773
        %3172 = vmatprep.subr.bf16.mxu0 0
        %3173 = vmatpush2.bf16.msra.mxu0 %v2772
        %3174 = vmatprep.subr.bf16.mxu0 0
        %3175 = vmatpush2.bf16.msra.mxu0 %v2771
        %3176 = vmatprep.mubr.bf16.mxu0 %v1910
        %3177 = vmatmul.mubr.bf16.gmra.mxu0 %v1909
        %v3178 = vpop.f32.mrf.mxu0
        %v3179 = vadd.f32 %v3138, %v3178
        %v3180 = vpop.f32.mrf.mxu0
        %v3181 = vpop.f32.mrf.mxu0
        %v3182 = vadd.f32 %v3141, %v3181
        %v3183 = vpop.f32.mrf.mxu0
        %3184 = vdwg.mxu0
        %3185 = vmatprep.subr.bf16.mxu0 0
        %3186 = vmatpush1.bf16.msra.mxu0 %v2786
        %3187 = vmatprep.subr.bf16.mxu0 0
        %3188 = vmatpush1.bf16.msra.mxu0 %v2785
        %3189 = vmatprep.subr.bf16.mxu0 0
        %3190 = vmatpush1.bf16.msra.mxu0 %v2784
        %3191 = vmatprep.subr.bf16.mxu0 0
        %3192 = vmatpush1.bf16.msra.mxu0 %v2783
        %3193 = vmatprep.subr.bf16.mxu0 0
        %3194 = vmatpush1.bf16.msra.mxu0 %v2782
        %3195 = vmatprep.subr.bf16.mxu0 0
        %3196 = vmatpush1.bf16.msra.mxu0 %v2781
        %3197 = vmatprep.subr.bf16.mxu0 0
        %3198 = vmatpush1.bf16.msra.mxu0 %v2780
        %3199 = vmatprep.subr.bf16.mxu0 0
        %3200 = vmatpush1.bf16.msra.mxu0 %v2779
        %3201 = vmatprep.subr.bf16.mxu0 0
        %3202 = vmatpush2.bf16.msra.mxu0 %v2794
        %3203 = vmatprep.subr.bf16.mxu0 0
        %3204 = vmatpush2.bf16.msra.mxu0 %v2793
        %3205 = vmatprep.subr.bf16.mxu0 0
        %3206 = vmatpush2.bf16.msra.mxu0 %v2792
        %3207 = vmatprep.subr.bf16.mxu0 0
        %3208 = vmatpush2.bf16.msra.mxu0 %v2791
        %3209 = vmatprep.subr.bf16.mxu0 0
        %3210 = vmatpush2.bf16.msra.mxu0 %v2790
        %3211 = vmatprep.subr.bf16.mxu0 0
        %3212 = vmatpush2.bf16.msra.mxu0 %v2789
        %3213 = vmatprep.subr.bf16.mxu0 0
        %3214 = vmatpush2.bf16.msra.mxu0 %v2788
        %3215 = vmatprep.subr.bf16.mxu0 0
        %3216 = vmatpush2.bf16.msra.mxu0 %v2787
        %3217 = vmatprep.mubr.bf16.mxu0 %v1912
        %3218 = vmatmul.mubr.bf16.gmra.mxu0 %v1911
        %v3219 = vpop.f32.mrf.mxu0
        %v3220 = vadd.f32 %v3179, %v3219
        %v3221 = vpop.f32.mrf.mxu0
        %v3222 = vpop.f32.mrf.mxu0
        %v3223 = vadd.f32 %v3182, %v3222
        %v3224 = vpop.f32.mrf.mxu0
        %3225 = vdwg.mxu0
        %3226 = vmatprep.subr.bf16.mxu0 0
        %3227 = vmatpush1.bf16.msra.mxu0 %v2802
        %3228 = vmatprep.subr.bf16.mxu0 0
        %3229 = vmatpush1.bf16.msra.mxu0 %v2801
        %3230 = vmatprep.subr.bf16.mxu0 0
        %3231 = vmatpush1.bf16.msra.mxu0 %v2800
        %3232 = vmatprep.subr.bf16.mxu0 0
        %3233 = vmatpush1.bf16.msra.mxu0 %v2799
        %3234 = vmatprep.subr.bf16.mxu0 0
        %3235 = vmatpush1.bf16.msra.mxu0 %v2798
        %3236 = vmatprep.subr.bf16.mxu0 0
        %3237 = vmatpush1.bf16.msra.mxu0 %v2797
        %3238 = vmatprep.subr.bf16.mxu0 0
        %3239 = vmatpush1.bf16.msra.mxu0 %v2796
        %3240 = vmatprep.subr.bf16.mxu0 0
        %3241 = vmatpush1.bf16.msra.mxu0 %v2795
        %3242 = vmatprep.subr.bf16.mxu0 0
        %3243 = vmatpush2.bf16.msra.mxu0 %v2810
        %3244 = vmatprep.subr.bf16.mxu0 0
        %3245 = vmatpush2.bf16.msra.mxu0 %v2809
        %3246 = vmatprep.subr.bf16.mxu0 0
        %3247 = vmatpush2.bf16.msra.mxu0 %v2808
        %3248 = vmatprep.subr.bf16.mxu0 0
        %3249 = vmatpush2.bf16.msra.mxu0 %v2807
        %3250 = vmatprep.subr.bf16.mxu0 0
        %3251 = vmatpush2.bf16.msra.mxu0 %v2806
        %3252 = vmatprep.subr.bf16.mxu0 0
        %3253 = vmatpush2.bf16.msra.mxu0 %v2805
        %3254 = vmatprep.subr.bf16.mxu0 0
        %3255 = vmatpush2.bf16.msra.mxu0 %v2804
        %3256 = vmatprep.subr.bf16.mxu0 0
        %3257 = vmatpush2.bf16.msra.mxu0 %v2803
        %3258 = vmatprep.mubr.bf16.mxu0 %v1914
        %3259 = vmatmul.mubr.bf16.gmra.mxu0 %v1913
        %v3260 = vpop.f32.mrf.mxu0
        %v3261 = vadd.f32 %v3220, %v3260
        %v3262 = vpop.f32.mrf.mxu0
        %v3263 = vpop.f32.mrf.mxu0
        %v3264 = vadd.f32 %v3223, %v3263
        %v3265 = vpop.f32.mrf.mxu0
        %3266 = vdwg.mxu0
        %p3267 = scmp.eq.s32.totalorder %s24, 0
        // Predicated region
        $region57: #{tpu_custom_call.1} parent=39 // pred_check
          %p3268 = pneg %p3267
        $region58: #{tpu_custom_call.1} parent=39 // pred_check_branch
          %3270 = sbr.rel (%p3268) target = $region60
        $region59: #{tpu_custom_call.1} parent=39 // pred_region
          %v3271 = vld [vmem:[%s4] sm:$0x1]
          %v3273 = vlaneseq
          %v3274 = vshrl.u32 %v3273, 7
          %v3275 = vsub.s32 0, %v3274
          %v3276 = vrot.slane %v3271, %v3275
          %v3278 = vadd.f32 %v3276, 0.0
          %3279 = vst [vmem:[#allocation10] sm:$0xff] %v3278
          %3280 = vst [vmem:[#allocation10 + $0x8] sm:$0xff] %v3278
        $region60: #{tpu_custom_call.1} parent=39 // pred_fallthru
          _
        %v3281 = vld [vmem:[#allocation10] sm:$0xff]
        %v3282 = vld [vmem:[#allocation10 + $0x8] sm:$0xff]
        %v3283 = vadd.f32 %v3281, %v3261
        %v3284 = vadd.f32 %v3282, %v3264
        %3285 = vst [vmem:[#allocation10] sm:$0xff] %v3283
        %3286 = vst [vmem:[#allocation10 + $0x8] sm:$0xff] %v3284
        // Predicated region
        $region61: #{tpu_custom_call.1} parent=39 // pred_check
          %p3287 = pneg %p157
        $region62: #{tpu_custom_call.1} parent=39 // pred_check_branch
          %3289 = sbr.rel (%p3287) target = $region64
        $region63: #{tpu_custom_call.1} parent=39 // pred_region
          %s3291 = ssub.s32 256, 256
          %3292 = vsyncadd [#allocation4], %s3291
          %s3293 = sshll.u32 [#allocation10], 4
          %s3294 = int_to_ptr.vmem [resolvable:$true] %s3293
          %3299 = dma.vmem_to_hbm [thread:$0]  %s3294, 256, %s5, [#allocation4], 128, 128, 8
        $region64: #{tpu_custom_call.1} parent=39 // pred_fallthru
          _
        // Predicated region
        $region65: #{tpu_custom_call.1} parent=39 // pred_check
          %p3300 = pneg %p157
        $region66: #{tpu_custom_call.1} parent=39 // pred_check_branch
          %3302 = sbr.rel (%p3300) target = $region68
        $region67: #{tpu_custom_call.1} parent=39 // pred_region
          %3303 = dma.done [#allocation4], 256
        $region68: #{tpu_custom_call.1} parent=39 // pred_fallthru
          _
      $region40: #{tpu_custom_call.1} parent=5 // pred_fallthru
        _
      %p3304 = scmp.le.s32.totalorder 2, %s19
      // Predicated region
      $region69: #{tpu_custom_call.1} parent=5 // pred_check
        %p3305 = pneg %p3304
      $region70: #{tpu_custom_call.1} parent=5 // pred_check_branch
        %3307 = sbr.rel (%p3305) target = $region72
      $region71: #{tpu_custom_call.1} parent=5 // pred_region
        %s3308 = ssub.s32 %s19, 2
      $region72: #{tpu_custom_call.1} parent=5 // pred_fallthru
        _
    $region6: #{tpu_custom_call.1} parent=1 // loop_footer
      %s23 = sadd.s32 1, %s19
    $region7: #{tpu_custom_call.1} parent=1 // loop_footer_branch
      %18 = sbr.rel target = $region3
    $region8: #{tpu_custom_call.1} parent=1 // loop_exit
      _
    %3309 = vsyncpa [#allocation3], 1
    %s3310 = scalar_lea.sflag [#allocation3], 1
    %3311 = vsyncpa %s3310, 1
    %3312 = vsyncpa [#allocation6], 1
    %s3313 = scalar_lea.sflag [#allocation6], 1
    %3314 = vsyncpa %s3313, 1
    %3315 = vsyncpa [#allocation9], 1
    %s3316 = scalar_lea.sflag [#allocation9], 1
    %3317 = vsyncpa %s3316, 1
    %3318 = vsyncpa [#allocation4], 1
    %s3319 = scalar_lea.sflag [#allocation4], 1
    %3320 = vsyncpa %s3319, 1

</llo_original>
